<compile_context>
chip_gen: v5e
topology: v5e:2x2
jax: 0.10.0
libtpu: 0.0.40
codegen_flags: <defaults>
</compile_context>

<pallas_src>
import functools
from typing import NamedTuple

import jax
import jax.numpy as jnp
from jax.experimental import pallas as pl
from jax.experimental.pallas import tpu as pltpu


class PackedParams(NamedTuple):
    wih: jax.Array    # (D, 3*HP)   fused/padded input->hidden weights  [r | z | n]
    whh: jax.Array    # (HP, 3*HP)  fused/padded hidden->hidden weights [r | z | n]
    bx: jax.Array     # (1, 3*HP)   b_ih (all gates) + b_hh (r, z gates), padded
    bhn: jax.Array    # (1, HP)     b_hh for the n gate, padded
    gamma: jax.Array  # (1, HP)     LayerNorm weight, zero-padded
    beta: jax.Array   # (1, HP)     LayerNorm bias, zero-padded


def _gru_ln_kernel(suppression_scale, ln_eps, T, B, H, HP,
                   x_ref, flag_ref, wih_ref, whh_ref, bx_ref, bhn_ref,
                   gamma_ref, beta_ref, out_ref):
    """Whole forward pass: suppression -> GRU over T steps -> LayerNorm.

    x_ref:    (B*T, D)    batch-major flattened features (row b*T + t)
    flag_ref: (B*T, 1)    saccade flags (same row ordering)
    wih_ref:  (D, 3*HP)   fused/padded input->hidden weights
    whh_ref:  (HP, 3*HP)  fused/padded hidden->hidden weights
    bx_ref:   (1, 3*HP)   folded x-side biases
    bhn_ref:  (1, HP)     hidden-side n-gate bias (must stay inside r*(...))
    gamma_ref/beta_ref: (1, HP)  LayerNorm affine, zero-padded
    out_ref:  (B, H)      LayerNorm(h_T)
    """
    # ---- saccadic suppression + hoisted input projection (one MXU dot) ----
    x = x_ref[...]                                     # (B*T, D)
    flags = flag_ref[...]                              # (B*T, 1)
    x = x * (1.0 - suppression_scale * flags)

    wih = wih_ref[...]
    gx = jnp.dot(x.astype(wih.dtype), wih,
                 preferred_element_type=jnp.float32) + bx_ref[...]
    # (B*T, 3*HP) -> (B, T, 3*HP): leading-dim split aligned to the 8-sublane
    # tiling, i.e. a free relayout; per-step access is a static sublane select.
    gx = gx.reshape(B, T, 3 * HP)

    b_hn = bhn_ref[...]                                # (1, HP)
    whh = whh_ref[...]                                 # load once, reuse for all T dots
    # TODO(synk): hold W_hh stationary in the MXU explicitly
    # (pltpu.matmul_push_rhs / matmul_acc_lhs / matmul_pop) once per-generation
    # column-tile orchestration is validated; compiler-scheduled dot for now.

    # ---- sequential GRU recurrence; h lives in vregs (loop carry) ----------
    h = jnp.zeros((B, HP), jnp.float32)
    for t in range(T):   # static full unroll at T=8; use lax.fori_loop(unroll=4) for large T
        gxt = gx[:, t, :]                              # (B, 3*HP)
        hh = jnp.dot(h.astype(whh.dtype), whh,
                     preferred_element_type=jnp.float32)     # (B, 3*HP)
        # r and z with ONE sigmoid over the contiguous 2*HP lane span.
        rz = jax.nn.sigmoid(gxt[:, :2 * HP] + hh[:, :2 * HP])
        r = rz[:, :HP]
        z = rz[:, HP:]
        n = jnp.tanh(gxt[:, 2 * HP:] + r * (hh[:, 2 * HP:] + b_hn))
        h = n + z * (h - n)                            # == (1-z)*n + z*h; padded lanes stay 0

    # ---- lane-dense LayerNorm epilogue -------------------------------------
    # Padded lanes of h are exactly 0, so full-HP sums equal the H-lane sums;
    # divide by H (not HP).  E[x^2]-mean^2 form keeps every reduce/store on
    # full 128-lane vregs; only the final store is H-wide.
    inv_h = 1.0 / H
    mean = jnp.sum(h, axis=-1, keepdims=True) * inv_h
    msq = jnp.sum(h * h, axis=-1, keepdims=True) * inv_h
    rstd = jax.lax.rsqrt(msq - mean * mean + ln_eps)
    y = (h - mean) * rstd * gamma_ref[...] + beta_ref[...]    # (B, HP)
    out_ref[...] = y[:, :H]


def pack_params(params, weights_dtype=jnp.float32):
    """One-time repack of GRU + LayerNorm params into the fused, lane-padded
    kernel layout.  Call ONCE at init — the ~10 tiny pad/scatter ops here
    would dominate end-to-end latency at B=2, T=8 if executed per call.

    weights_dtype=jnp.bfloat16 is recommended on v6e/v7x (MXU-native; cuts
    weight passes ~3x) but loosens accuracy over the 8-step recurrence;
    keep float32 on v5e or when validating against a 1e-4 tolerance.
    """
    w_ih, w_hh, b_ih, b_hh, gamma, beta = params
    D = w_ih.shape[1]
    H = w_hh.shape[-1]
    HP = ((H + 127) // 128) * 128                     # lane-padded gate width

    # Gate-fused, lane-padded weights: gate g occupies columns [g*HP, g*HP+H).
    wih_p = jnp.zeros((D, 3 * HP), jnp.float32)
    whh_p = jnp.zeros((HP, 3 * HP), jnp.float32)
    for g in range(3):
        wih_p = wih_p.at[:, g * HP:g * HP + H].set(w_ih[g])
        whh_p = whh_p.at[:H, g * HP:g * HP + H].set(w_hh[g])

    # Fold b_ih (all gates) and b_hh (r, z) into the x-projection bias;
    # b_hh for n must stay inside r * (h @ W_hn + b_hn).
    bx_p = jnp.zeros((1, 3 * HP), jnp.float32)
    bx_p = bx_p.at[:, 0 * HP:0 * HP + H].set(b_ih[0] + b_hh[0])   # r
    bx_p = bx_p.at[:, 1 * HP:1 * HP + H].set(b_ih[1] + b_hh[1])   # z
    bx_p = bx_p.at[:, 2 * HP:2 * HP + H].set(b_ih[2])             # n (input bias only)
    bhn_p = jnp.zeros((1, HP), jnp.float32).at[:, :H].set(b_hh[2])

    gamma_p = jnp.zeros((1, HP), jnp.float32).at[:, :H].set(gamma)
    beta_p = jnp.zeros((1, HP), jnp.float32).at[:, :H].set(beta)

    return PackedParams(wih_p.astype(weights_dtype),
                        whh_p.astype(weights_dtype),
                        bx_p, bhn_p, gamma_p, beta_p)


def predictive_coding_gru(saccade_feats, saccade_flags, packed, hidden_dim,
                          suppression_scale=0.3, ln_eps=1e-5):
    """saccade_feats: (B, T, D) f32; saccade_flags: (B, T) f32 -> (B, H) f32.

    `packed` must come from pack_params() (init-time).  The per-call path is
    two bitcast reshapes + one pallas_call; jit it for zero-overhead dispatch.
    """
    B, T, D = saccade_feats.shape
    H = hidden_dim
    HP = packed.whh.shape[0]

    # Batch-major flattens (row b*T + t): contiguous, so no transpose and the
    # reshapes are metadata-only.
    x2 = saccade_feats.reshape(B * T, D)
    f2 = saccade_flags.reshape(B * T, 1).astype(saccade_feats.dtype)

    kernel = functools.partial(_gru_ln_kernel, suppression_scale, ln_eps,
                               T, B, H, HP)

    # Single invocation, no grid: at these shapes per-grid-step pipeline
    # bookkeeping would dominate.  For B >= 8 on v7x, add a leading batch grid
    # axis with dimension_semantics=("parallel",) to use both TensorCores.
    in_specs = [pl.BlockSpec(memory_space=pltpu.MemorySpace.VMEM)
                for _ in range(8)]
    return pl.pallas_call(
        kernel,
        out_shape=jax.ShapeDtypeStruct((B, H), jnp.float32),
        in_specs=in_specs,
        out_specs=pl.BlockSpec(memory_space=pltpu.MemorySpace.VMEM),
    )(x2, f2, packed.wih, packed.whh, packed.bx, packed.bhn,
      packed.gamma, packed.beta)


def init_params(key, input_dim, hidden_dim):
    """Deterministic synthetic parameters mirroring nn.GRU / nn.LayerNorm shapes."""
    k = 1.0 / jnp.sqrt(hidden_dim)
    keys = jax.random.split(key, 4)
    # PyTorch stores weight_ih_l0 as (3H, D); we keep a gate-split transposed
    # layout (3, D, H) [gate order r, z, n] so x @ W works directly.
    w_ih = jax.random.uniform(keys[0], (3, input_dim, hidden_dim),
                              minval=-k, maxval=k, dtype=jnp.float32)
    w_hh = jax.random.uniform(keys[1], (3, hidden_dim, hidden_dim),
                              minval=-k, maxval=k, dtype=jnp.float32)
    b_ih = jax.random.uniform(keys[2], (3, 1, hidden_dim),
                              minval=-k, maxval=k, dtype=jnp.float32)
    b_hh = jax.random.uniform(keys[3], (3, 1, hidden_dim),
                              minval=-k, maxval=k, dtype=jnp.float32)
    gamma = jnp.ones((1, hidden_dim), jnp.float32)   # LayerNorm weight
    beta = jnp.zeros((1, hidden_dim), jnp.float32)   # LayerNorm bias
    return (w_ih, w_hh, b_ih, b_hh, gamma, beta)


def reference(saccade_feats, saccade_flags, params,
              suppression_scale=0.3, ln_eps=1e-5):
    """Pure-JAX reference of the PyTorch forward pass."""
    w_ih, w_hh, b_ih, b_hh, gamma, beta = params
    supp = 1.0 - suppression_scale * saccade_flags[..., None]
    x = saccade_feats * supp                       # (B, T, D)
    B = x.shape[0]
    H = w_hh.shape[-1]

    def step(h, xt):
        i_r = xt @ w_ih[0] + b_ih[0]
        i_z = xt @ w_ih[1] + b_ih[1]
        i_n = xt @ w_ih[2] + b_ih[2]
        h_r = h @ w_hh[0] + b_hh[0]
        h_z = h @ w_hh[1] + b_hh[1]
        h_n = h @ w_hh[2] + b_hh[2]
        r = jax.nn.sigmoid(i_r + h_r)
        z = jax.nn.sigmoid(i_z + h_z)
        n = jnp.tanh(i_n + r * h_n)
        h_new = (1.0 - z) * n + z * h
        return h_new, None

    h0 = jnp.zeros((B, H), jnp.float32)
    h_final, _ = jax.lax.scan(step, h0, jnp.transpose(x, (1, 0, 2)))
    mean = jnp.mean(h_final, axis=-1, keepdims=True)
    var = jnp.mean((h_final - mean) ** 2, axis=-1, keepdims=True)
    return (h_final - mean) / jnp.sqrt(var + ln_eps) * gamma + beta


if __name__ == "__main__":
    B, T, D, H = 2, 8, 16, 96   # batch, num_saccades, input_dim, hidden_dim (module default 96)

    key = jax.random.PRNGKey(0)
    k_feat, k_flag, k_param = jax.random.split(key, 3)

    saccade_feats = jax.random.normal(k_feat, (B, T, D), dtype=jnp.float32)
    saccade_flags = (jax.random.uniform(k_flag, (B, T)) > 0.5).astype(jnp.float32)
    params = init_params(k_param, D, H)

    # Init-time packing (hoisted out of the hot path).  Use
    # weights_dtype=jnp.bfloat16 on v6e/v7x if a looser tolerance is OK.
    packed = pack_params(params, weights_dtype=jnp.float32)

    fwd = jax.jit(functools.partial(predictive_coding_gru, hidden_dim=H))
    out = fwd(saccade_feats, saccade_flags, packed)
    out = jax.block_until_ready(out)

    ref = reference(saccade_feats, saccade_flags, params)
    assert out.shape == (B, H)
    assert jnp.allclose(out, ref, atol=1e-4, rtol=1e-4), \
        f"max abs err {jnp.max(jnp.abs(out - ref))}"

    print("KERNEL_OK")
</pallas_src>

<mosaic_0001>
module attributes {stable_mosaic.version = 11 : i64} {
  func.func @_gru_ln_kernel(%arg0: memref<16x16xf32, #tpu.memory_space<vmem>>, %arg1: memref<16x1xf32, #tpu.memory_space<vmem>>, %arg2: memref<16x384xf32, #tpu.memory_space<vmem>>, %arg3: memref<128x384xf32, #tpu.memory_space<vmem>>, %arg4: memref<1x384xf32, #tpu.memory_space<vmem>>, %arg5: memref<1x128xf32, #tpu.memory_space<vmem>>, %arg6: memref<1x128xf32, #tpu.memory_space<vmem>>, %arg7: memref<1x128xf32, #tpu.memory_space<vmem>>, %arg8: memref<2x96xf32, #tpu.memory_space<vmem>>) attributes {dimension_semantics = [], scalar_prefetch = 0 : i64, scratch_operands = 0 : i64, tpu.core_type = #tpu.core_type<tc>} {
    %c0 = arith.constant 0 : index
    %c0_0 = arith.constant 0 : index
    %0 = vector.load %arg0[%c0, %c0_0] : memref<16x16xf32, #tpu.memory_space<vmem>>, vector<16x16xf32>
    %c0_1 = arith.constant 0 : index
    %c0_2 = arith.constant 0 : index
    %1 = vector.load %arg1[%c0_1, %c0_2] : memref<16x1xf32, #tpu.memory_space<vmem>>, vector<16x1xf32>
    %cst = arith.constant 3.000000e-01 : f32
    %2 = vector.broadcast %cst : f32 to vector<16x1xf32>
    %3 = arith.mulf %2, %1 : vector<16x1xf32>
    %cst_3 = arith.constant 1.000000e+00 : f32
    %4 = vector.broadcast %cst_3 : f32 to vector<16x1xf32>
    %5 = arith.subf %4, %3 : vector<16x1xf32>
    %6 = vector.broadcast %5 : vector<16x1xf32> to vector<16x16xf32>
    %7 = arith.mulf %0, %6 : vector<16x16xf32>
    %c0_4 = arith.constant 0 : index
    %c0_5 = arith.constant 0 : index
    %8 = vector.load %arg2[%c0_4, %c0_5] : memref<16x384xf32, #tpu.memory_space<vmem>>, vector<16x384xf32>
    %cst_6 = arith.constant dense<0.000000e+00> : vector<16x384xf32>
    %9 = tpu.matmul %7, %8, %cst_6 {dimension_numbers = #tpu.dot_dimension_numbers<[1], [0], [0], [1], [0, 0, 1, 1], [], []>} : vector<16x16xf32>, vector<16x384xf32>, vector<16x384xf32> -> vector<16x384xf32>
    %c0_7 = arith.constant 0 : index
    %c0_8 = arith.constant 0 : index
    %10 = vector.load %arg4[%c0_7, %c0_8] : memref<1x384xf32, #tpu.memory_space<vmem>>, vector<1x384xf32>
    %11 = vector.broadcast %10 : vector<1x384xf32> to vector<16x384xf32>
    %12 = arith.addf %9, %11 : vector<16x384xf32>
    %13 = vector.shape_cast %12 : vector<16x384xf32> to vector<2x8x384xf32>
    %c0_9 = arith.constant 0 : index
    %c0_10 = arith.constant 0 : index
    %14 = vector.load %arg5[%c0_9, %c0_10] : memref<1x128xf32, #tpu.memory_space<vmem>>, vector<1x128xf32>
    %c0_11 = arith.constant 0 : index
    %c0_12 = arith.constant 0 : index
    %15 = vector.load %arg3[%c0_11, %c0_12] : memref<128x384xf32, #tpu.memory_space<vmem>>, vector<128x384xf32>
    %cst_13 = arith.constant 0.000000e+00 : f32
    %16 = vector.broadcast %cst_13 : f32 to vector<2x128xf32>
    %17 = vector.extract_strided_slice %13 {offsets = [0, 0, 0], sizes = [2, 1, 384], strides = [1, 1, 1]} : vector<2x8x384xf32> to vector<2x1x384xf32>
    %18 = vector.shape_cast %17 : vector<2x1x384xf32> to vector<2x384xf32>
    %cst_14 = arith.constant dense<0.000000e+00> : vector<2x384xf32>
    %19 = tpu.matmul %16, %15, %cst_14 {dimension_numbers = #tpu.dot_dimension_numbers<[1], [0], [0], [1], [0, 0, 1, 1], [], []>} : vector<2x128xf32>, vector<128x384xf32>, vector<2x384xf32> -> vector<2x384xf32>
    %20 = vector.extract_strided_slice %18 {offsets = [0, 0], sizes = [2, 256], strides = [1, 1]} : vector<2x384xf32> to vector<2x256xf32>
    %21 = vector.extract_strided_slice %19 {offsets = [0, 0], sizes = [2, 256], strides = [1, 1]} : vector<2x384xf32> to vector<2x256xf32>
    %22 = arith.addf %20, %21 : vector<2x256xf32>
    %23 = arith.negf %22 : vector<2x256xf32>
    %24 = math.exp %23 : vector<2x256xf32>
    %cst_15 = arith.constant 1.000000e+00 : f32
    %25 = vector.broadcast %cst_15 : f32 to vector<2x256xf32>
    %26 = arith.addf %25, %24 : vector<2x256xf32>
    %27 = arith.divf %25, %26 : vector<2x256xf32>
    %28 = vector.extract_strided_slice %27 {offsets = [0, 0], sizes = [2, 128], strides = [1, 1]} : vector<2x256xf32> to vector<2x128xf32>
    %29 = vector.extract_strided_slice %27 {offsets = [0, 128], sizes = [2, 128], strides = [1, 1]} : vector<2x256xf32> to vector<2x128xf32>
    %30 = vector.extract_strided_slice %18 {offsets = [0, 256], sizes = [2, 128], strides = [1, 1]} : vector<2x384xf32> to vector<2x128xf32>
    %31 = vector.extract_strided_slice %19 {offsets = [0, 256], sizes = [2, 128], strides = [1, 1]} : vector<2x384xf32> to vector<2x128xf32>
    %32 = vector.broadcast %14 : vector<1x128xf32> to vector<2x128xf32>
    %33 = arith.addf %31, %32 : vector<2x128xf32>
    %34 = arith.mulf %28, %33 : vector<2x128xf32>
    %35 = arith.addf %30, %34 : vector<2x128xf32>
    %36 = math.tanh %35 : vector<2x128xf32>
    %37 = arith.subf %16, %36 : vector<2x128xf32>
    %38 = arith.mulf %29, %37 : vector<2x128xf32>
    %39 = arith.addf %36, %38 : vector<2x128xf32>
    %40 = vector.extract_strided_slice %13 {offsets = [0, 1, 0], sizes = [2, 1, 384], strides = [1, 1, 1]} : vector<2x8x384xf32> to vector<2x1x384xf32>
    %41 = vector.shape_cast %40 : vector<2x1x384xf32> to vector<2x384xf32>
    %cst_16 = arith.constant dense<0.000000e+00> : vector<2x384xf32>
    %42 = tpu.matmul %39, %15, %cst_16 {dimension_numbers = #tpu.dot_dimension_numbers<[1], [0], [0], [1], [0, 0, 1, 1], [], []>} : vector<2x128xf32>, vector<128x384xf32>, vector<2x384xf32> -> vector<2x384xf32>
    %43 = vector.extract_strided_slice %41 {offsets = [0, 0], sizes = [2, 256], strides = [1, 1]} : vector<2x384xf32> to vector<2x256xf32>
    %44 = vector.extract_strided_slice %42 {offsets = [0, 0], sizes = [2, 256], strides = [1, 1]} : vector<2x384xf32> to vector<2x256xf32>
    %45 = arith.addf %43, %44 : vector<2x256xf32>
    %46 = arith.negf %45 : vector<2x256xf32>
    %47 = math.exp %46 : vector<2x256xf32>
    %cst_17 = arith.constant 1.000000e+00 : f32
    %48 = vector.broadcast %cst_17 : f32 to vector<2x256xf32>
    %49 = arith.addf %48, %47 : vector<2x256xf32>
    %50 = arith.divf %48, %49 : vector<2x256xf32>
    %51 = vector.extract_strided_slice %50 {offsets = [0, 0], sizes = [2, 128], strides = [1, 1]} : vector<2x256xf32> to vector<2x128xf32>
    %52 = vector.extract_strided_slice %50 {offsets = [0, 128], sizes = [2, 128], strides = [1, 1]} : vector<2x256xf32> to vector<2x128xf32>
    %53 = vector.extract_strided_slice %41 {offsets = [0, 256], sizes = [2, 128], strides = [1, 1]} : vector<2x384xf32> to vector<2x128xf32>
    %54 = vector.extract_strided_slice %42 {offsets = [0, 256], sizes = [2, 128], strides = [1, 1]} : vector<2x384xf32> to vector<2x128xf32>
    %55 = vector.broadcast %14 : vector<1x128xf32> to vector<2x128xf32>
    %56 = arith.addf %54, %55 : vector<2x128xf32>
    %57 = arith.mulf %51, %56 : vector<2x128xf32>
    %58 = arith.addf %53, %57 : vector<2x128xf32>
    %59 = math.tanh %58 : vector<2x128xf32>
    %60 = arith.subf %39, %59 : vector<2x128xf32>
    %61 = arith.mulf %52, %60 : vector<2x128xf32>
    %62 = arith.addf %59, %61 : vector<2x128xf32>
    %63 = vector.extract_strided_slice %13 {offsets = [0, 2, 0], sizes = [2, 1, 384], strides = [1, 1, 1]} : vector<2x8x384xf32> to vector<2x1x384xf32>
    %64 = vector.shape_cast %63 : vector<2x1x384xf32> to vector<2x384xf32>
    %cst_18 = arith.constant dense<0.000000e+00> : vector<2x384xf32>
    %65 = tpu.matmul %62, %15, %cst_18 {dimension_numbers = #tpu.dot_dimension_numbers<[1], [0], [0], [1], [0, 0, 1, 1], [], []>} : vector<2x128xf32>, vector<128x384xf32>, vector<2x384xf32> -> vector<2x384xf32>
    %66 = vector.extract_strided_slice %64 {offsets = [0, 0], sizes = [2, 256], strides = [1, 1]} : vector<2x384xf32> to vector<2x256xf32>
    %67 = vector.extract_strided_slice %65 {offsets = [0, 0], sizes = [2, 256], strides = [1, 1]} : vector<2x384xf32> to vector<2x256xf32>
    %68 = arith.addf %66, %67 : vector<2x256xf32>
    %69 = arith.negf %68 : vector<2x256xf32>
    %70 = math.exp %69 : vector<2x256xf32>
    %cst_19 = arith.constant 1.000000e+00 : f32
    %71 = vector.broadcast %cst_19 : f32 to vector<2x256xf32>
    %72 = arith.addf %71, %70 : vector<2x256xf32>
    %73 = arith.divf %71, %72 : vector<2x256xf32>
    %74 = vector.extract_strided_slice %73 {offsets = [0, 0], sizes = [2, 128], strides = [1, 1]} : vector<2x256xf32> to vector<2x128xf32>
    %75 = vector.extract_strided_slice %73 {offsets = [0, 128], sizes = [2, 128], strides = [1, 1]} : vector<2x256xf32> to vector<2x128xf32>
    %76 = vector.extract_strided_slice %64 {offsets = [0, 256], sizes = [2, 128], strides = [1, 1]} : vector<2x384xf32> to vector<2x128xf32>
    %77 = vector.extract_strided_slice %65 {offsets = [0, 256], sizes = [2, 128], strides = [1, 1]} : vector<2x384xf32> to vector<2x128xf32>
    %78 = vector.broadcast %14 : vector<1x128xf32> to vector<2x128xf32>
    %79 = arith.addf %77, %78 : vector<2x128xf32>
    %80 = arith.mulf %74, %79 : vector<2x128xf32>
    %81 = arith.addf %76, %80 : vector<2x128xf32>
    %82 = math.tanh %81 : vector<2x128xf32>
    %83 = arith.subf %62, %82 : vector<2x128xf32>
    %84 = arith.mulf %75, %83 : vector<2x128xf32>
    %85 = arith.addf %82, %84 : vector<2x128xf32>
    %86 = vector.extract_strided_slice %13 {offsets = [0, 3, 0], sizes = [2, 1, 384], strides = [1, 1, 1]} : vector<2x8x384xf32> to vector<2x1x384xf32>
    %87 = vector.shape_cast %86 : vector<2x1x384xf32> to vector<2x384xf32>
    %cst_20 = arith.constant dense<0.000000e+00> : vector<2x384xf32>
    %88 = tpu.matmul %85, %15, %cst_20 {dimension_numbers = #tpu.dot_dimension_numbers<[1], [0], [0], [1], [0, 0, 1, 1], [], []>} : vector<2x128xf32>, vector<128x384xf32>, vector<2x384xf32> -> vector<2x384xf32>
    %89 = vector.extract_strided_slice %87 {offsets = [0, 0], sizes = [2, 256], strides = [1, 1]} : vector<2x384xf32> to vector<2x256xf32>
    %90 = vector.extract_strided_slice %88 {offsets = [0, 0], sizes = [2, 256], strides = [1, 1]} : vector<2x384xf32> to vector<2x256xf32>
    %91 = arith.addf %89, %90 : vector<2x256xf32>
    %92 = arith.negf %91 : vector<2x256xf32>
    %93 = math.exp %92 : vector<2x256xf32>
    %cst_21 = arith.constant 1.000000e+00 : f32
    %94 = vector.broadcast %cst_21 : f32 to vector<2x256xf32>
    %95 = arith.addf %94, %93 : vector<2x256xf32>
    %96 = arith.divf %94, %95 : vector<2x256xf32>
    %97 = vector.extract_strided_slice %96 {offsets = [0, 0], sizes = [2, 128], strides = [1, 1]} : vector<2x256xf32> to vector<2x128xf32>
    %98 = vector.extract_strided_slice %96 {offsets = [0, 128], sizes = [2, 128], strides = [1, 1]} : vector<2x256xf32> to vector<2x128xf32>
    %99 = vector.extract_strided_slice %87 {offsets = [0, 256], sizes = [2, 128], strides = [1, 1]} : vector<2x384xf32> to vector<2x128xf32>
    %100 = vector.extract_strided_slice %88 {offsets = [0, 256], sizes = [2, 128], strides = [1, 1]} : vector<2x384xf32> to vector<2x128xf32>
    %101 = vector.broadcast %14 : vector<1x128xf32> to vector<2x128xf32>
    %102 = arith.addf %100, %101 : vector<2x128xf32>
    %103 = arith.mulf %97, %102 : vector<2x128xf32>
    %104 = arith.addf %99, %103 : vector<2x128xf32>
    %105 = math.tanh %104 : vector<2x128xf32>
    %106 = arith.subf %85, %105 : vector<2x128xf32>
    %107 = arith.mulf %98, %106 : vector<2x128xf32>
    %108 = arith.addf %105, %107 : vector<2x128xf32>
    %109 = vector.extract_strided_slice %13 {offsets = [0, 4, 0], sizes = [2, 1, 384], strides = [1, 1, 1]} : vector<2x8x384xf32> to vector<2x1x384xf32>
    %110 = vector.shape_cast %109 : vector<2x1x384xf32> to vector<2x384xf32>
    %cst_22 = arith.constant dense<0.000000e+00> : vector<2x384xf32>
    %111 = tpu.matmul %108, %15, %cst_22 {dimension_numbers = #tpu.dot_dimension_numbers<[1], [0], [0], [1], [0, 0, 1, 1], [], []>} : vector<2x128xf32>, vector<128x384xf32>, vector<2x384xf32> -> vector<2x384xf32>
    %112 = vector.extract_strided_slice %110 {offsets = [0, 0], sizes = [2, 256], strides = [1, 1]} : vector<2x384xf32> to vector<2x256xf32>
    %113 = vector.extract_strided_slice %111 {offsets = [0, 0], sizes = [2, 256], strides = [1, 1]} : vector<2x384xf32> to vector<2x256xf32>
    %114 = arith.addf %112, %113 : vector<2x256xf32>
    %115 = arith.negf %114 : vector<2x256xf32>
    %116 = math.exp %115 : vector<2x256xf32>
    %cst_23 = arith.constant 1.000000e+00 : f32
    %117 = vector.broadcast %cst_23 : f32 to vector<2x256xf32>
    %118 = arith.addf %117, %116 : vector<2x256xf32>
    %119 = arith.divf %117, %118 : vector<2x256xf32>
    %120 = vector.extract_strided_slice %119 {offsets = [0, 0], sizes = [2, 128], strides = [1, 1]} : vector<2x256xf32> to vector<2x128xf32>
    %121 = vector.extract_strided_slice %119 {offsets = [0, 128], sizes = [2, 128], strides = [1, 1]} : vector<2x256xf32> to vector<2x128xf32>
    %122 = vector.extract_strided_slice %110 {offsets = [0, 256], sizes = [2, 128], strides = [1, 1]} : vector<2x384xf32> to vector<2x128xf32>
    %123 = vector.extract_strided_slice %111 {offsets = [0, 256], sizes = [2, 128], strides = [1, 1]} : vector<2x384xf32> to vector<2x128xf32>
    %124 = vector.broadcast %14 : vector<1x128xf32> to vector<2x128xf32>
    %125 = arith.addf %123, %124 : vector<2x128xf32>
    %126 = arith.mulf %120, %125 : vector<2x128xf32>
    %127 = arith.addf %122, %126 : vector<2x128xf32>
    %128 = math.tanh %127 : vector<2x128xf32>
    %129 = arith.subf %108, %128 : vector<2x128xf32>
    %130 = arith.mulf %121, %129 : vector<2x128xf32>
    %131 = arith.addf %128, %130 : vector<2x128xf32>
    %132 = vector.extract_strided_slice %13 {offsets = [0, 5, 0], sizes = [2, 1, 384], strides = [1, 1, 1]} : vector<2x8x384xf32> to vector<2x1x384xf32>
    %133 = vector.shape_cast %132 : vector<2x1x384xf32> to vector<2x384xf32>
    %cst_24 = arith.constant dense<0.000000e+00> : vector<2x384xf32>
    %134 = tpu.matmul %131, %15, %cst_24 {dimension_numbers = #tpu.dot_dimension_numbers<[1], [0], [0], [1], [0, 0, 1, 1], [], []>} : vector<2x128xf32>, vector<128x384xf32>, vector<2x384xf32> -> vector<2x384xf32>
    %135 = vector.extract_strided_slice %133 {offsets = [0, 0], sizes = [2, 256], strides = [1, 1]} : vector<2x384xf32> to vector<2x256xf32>
    %136 = vector.extract_strided_slice %134 {offsets = [0, 0], sizes = [2, 256], strides = [1, 1]} : vector<2x384xf32> to vector<2x256xf32>
    %137 = arith.addf %135, %136 : vector<2x256xf32>
    %138 = arith.negf %137 : vector<2x256xf32>
    %139 = math.exp %138 : vector<2x256xf32>
    %cst_25 = arith.constant 1.000000e+00 : f32
    %140 = vector.broadcast %cst_25 : f32 to vector<2x256xf32>
    %141 = arith.addf %140, %139 : vector<2x256xf32>
    %142 = arith.divf %140, %141 : vector<2x256xf32>
    %143 = vector.extract_strided_slice %142 {offsets = [0, 0], sizes = [2, 128], strides = [1, 1]} : vector<2x256xf32> to vector<2x128xf32>
    %144 = vector.extract_strided_slice %142 {offsets = [0, 128], sizes = [2, 128], strides = [1, 1]} : vector<2x256xf32> to vector<2x128xf32>
    %145 = vector.extract_strided_slice %133 {offsets = [0, 256], sizes = [2, 128], strides = [1, 1]} : vector<2x384xf32> to vector<2x128xf32>
    %146 = vector.extract_strided_slice %134 {offsets = [0, 256], sizes = [2, 128], strides = [1, 1]} : vector<2x384xf32> to vector<2x128xf32>
    %147 = vector.broadcast %14 : vector<1x128xf32> to vector<2x128xf32>
    %148 = arith.addf %146, %147 : vector<2x128xf32>
    %149 = arith.mulf %143, %148 : vector<2x128xf32>
    %150 = arith.addf %145, %149 : vector<2x128xf32>
    %151 = math.tanh %150 : vector<2x128xf32>
    %152 = arith.subf %131, %151 : vector<2x128xf32>
    %153 = arith.mulf %144, %152 : vector<2x128xf32>
    %154 = arith.addf %151, %153 : vector<2x128xf32>
    %155 = vector.extract_strided_slice %13 {offsets = [0, 6, 0], sizes = [2, 1, 384], strides = [1, 1, 1]} : vector<2x8x384xf32> to vector<2x1x384xf32>
    %156 = vector.shape_cast %155 : vector<2x1x384xf32> to vector<2x384xf32>
    %cst_26 = arith.constant dense<0.000000e+00> : vector<2x384xf32>
    %157 = tpu.matmul %154, %15, %cst_26 {dimension_numbers = #tpu.dot_dimension_numbers<[1], [0], [0], [1], [0, 0, 1, 1], [], []>} : vector<2x128xf32>, vector<128x384xf32>, vector<2x384xf32> -> vector<2x384xf32>
    %158 = vector.extract_strided_slice %156 {offsets = [0, 0], sizes = [2, 256], strides = [1, 1]} : vector<2x384xf32> to vector<2x256xf32>
    %159 = vector.extract_strided_slice %157 {offsets = [0, 0], sizes = [2, 256], strides = [1, 1]} : vector<2x384xf32> to vector<2x256xf32>
    %160 = arith.addf %158, %159 : vector<2x256xf32>
    %161 = arith.negf %160 : vector<2x256xf32>
    %162 = math.exp %161 : vector<2x256xf32>
    %cst_27 = arith.constant 1.000000e+00 : f32
    %163 = vector.broadcast %cst_27 : f32 to vector<2x256xf32>
    %164 = arith.addf %163, %162 : vector<2x256xf32>
    %165 = arith.divf %163, %164 : vector<2x256xf32>
    %166 = vector.extract_strided_slice %165 {offsets = [0, 0], sizes = [2, 128], strides = [1, 1]} : vector<2x256xf32> to vector<2x128xf32>
    %167 = vector.extract_strided_slice %165 {offsets = [0, 128], sizes = [2, 128], strides = [1, 1]} : vector<2x256xf32> to vector<2x128xf32>
    %168 = vector.extract_strided_slice %156 {offsets = [0, 256], sizes = [2, 128], strides = [1, 1]} : vector<2x384xf32> to vector<2x128xf32>
    %169 = vector.extract_strided_slice %157 {offsets = [0, 256], sizes = [2, 128], strides = [1, 1]} : vector<2x384xf32> to vector<2x128xf32>
    %170 = vector.broadcast %14 : vector<1x128xf32> to vector<2x128xf32>
    %171 = arith.addf %169, %170 : vector<2x128xf32>
    %172 = arith.mulf %166, %171 : vector<2x128xf32>
    %173 = arith.addf %168, %172 : vector<2x128xf32>
    %174 = math.tanh %173 : vector<2x128xf32>
    %175 = arith.subf %154, %174 : vector<2x128xf32>
    %176 = arith.mulf %167, %175 : vector<2x128xf32>
    %177 = arith.addf %174, %176 : vector<2x128xf32>
    %178 = vector.extract_strided_slice %13 {offsets = [0, 7, 0], sizes = [2, 1, 384], strides = [1, 1, 1]} : vector<2x8x384xf32> to vector<2x1x384xf32>
    %179 = vector.shape_cast %178 : vector<2x1x384xf32> to vector<2x384xf32>
    %cst_28 = arith.constant dense<0.000000e+00> : vector<2x384xf32>
    %180 = tpu.matmul %177, %15, %cst_28 {dimension_numbers = #tpu.dot_dimension_numbers<[1], [0], [0], [1], [0, 0, 1, 1], [], []>} : vector<2x128xf32>, vector<128x384xf32>, vector<2x384xf32> -> vector<2x384xf32>
    %181 = vector.extract_strided_slice %179 {offsets = [0, 0], sizes = [2, 256], strides = [1, 1]} : vector<2x384xf32> to vector<2x256xf32>
    %182 = vector.extract_strided_slice %180 {offsets = [0, 0], sizes = [2, 256], strides = [1, 1]} : vector<2x384xf32> to vector<2x256xf32>
    %183 = arith.addf %181, %182 : vector<2x256xf32>
    %184 = arith.negf %183 : vector<2x256xf32>
    %185 = math.exp %184 : vector<2x256xf32>
    %cst_29 = arith.constant 1.000000e+00 : f32
    %186 = vector.broadcast %cst_29 : f32 to vector<2x256xf32>
    %187 = arith.addf %186, %185 : vector<2x256xf32>
    %188 = arith.divf %186, %187 : vector<2x256xf32>
    %189 = vector.extract_strided_slice %188 {offsets = [0, 0], sizes = [2, 128], strides = [1, 1]} : vector<2x256xf32> to vector<2x128xf32>
    %190 = vector.extract_strided_slice %188 {offsets = [0, 128], sizes = [2, 128], strides = [1, 1]} : vector<2x256xf32> to vector<2x128xf32>
    %191 = vector.extract_strided_slice %179 {offsets = [0, 256], sizes = [2, 128], strides = [1, 1]} : vector<2x384xf32> to vector<2x128xf32>
    %192 = vector.extract_strided_slice %180 {offsets = [0, 256], sizes = [2, 128], strides = [1, 1]} : vector<2x384xf32> to vector<2x128xf32>
    %193 = vector.broadcast %14 : vector<1x128xf32> to vector<2x128xf32>
    %194 = arith.addf %192, %193 : vector<2x128xf32>
    %195 = arith.mulf %189, %194 : vector<2x128xf32>
    %196 = arith.addf %191, %195 : vector<2x128xf32>
    %197 = math.tanh %196 : vector<2x128xf32>
    %198 = arith.subf %177, %197 : vector<2x128xf32>
    %199 = arith.mulf %190, %198 : vector<2x128xf32>
    %200 = arith.addf %197, %199 : vector<2x128xf32>
    %cst_30 = arith.constant dense<0.000000e+00> : vector<2xf32>
    %201 = vector.multi_reduction <add>, %200, %cst_30 [1] : vector<2x128xf32> to vector<2xf32>
    %202 = vector.shape_cast %201 : vector<2xf32> to vector<2x1xf32>
    %cst_31 = arith.constant 0.010416667 : f32
    %203 = vector.broadcast %cst_31 : f32 to vector<2x1xf32>
    %204 = arith.mulf %202, %203 : vector<2x1xf32>
    %205 = arith.mulf %200, %200 : vector<2x128xf32>
    %cst_32 = arith.constant dense<0.000000e+00> : vector<2xf32>
    %206 = vector.multi_reduction <add>, %205, %cst_32 [1] : vector<2x128xf32> to vector<2xf32>
    %207 = vector.shape_cast %206 : vector<2xf32> to vector<2x1xf32>
    %cst_33 = arith.constant 0.010416667 : f32
    %208 = vector.broadcast %cst_33 : f32 to vector<2x1xf32>
    %209 = arith.mulf %207, %208 : vector<2x1xf32>
    %210 = arith.mulf %204, %204 : vector<2x1xf32>
    %211 = arith.subf %209, %210 : vector<2x1xf32>
    %cst_34 = arith.constant 9.99999974E-6 : f32
    %212 = vector.broadcast %cst_34 : f32 to vector<2x1xf32>
    %213 = arith.addf %211, %212 : vector<2x1xf32>
    %214 = math.rsqrt %213 : vector<2x1xf32>
    %215 = vector.broadcast %204 : vector<2x1xf32> to vector<2x128xf32>
    %216 = arith.subf %200, %215 : vector<2x128xf32>
    %217 = vector.broadcast %214 : vector<2x1xf32> to vector<2x128xf32>
    %218 = arith.mulf %216, %217 : vector<2x128xf32>
    %c0_35 = arith.constant 0 : index
    %c0_36 = arith.constant 0 : index
    %219 = vector.load %arg6[%c0_35, %c0_36] : memref<1x128xf32, #tpu.memory_space<vmem>>, vector<1x128xf32>
    %220 = vector.broadcast %219 : vector<1x128xf32> to vector<2x128xf32>
    %221 = arith.mulf %218, %220 : vector<2x128xf32>
    %c0_37 = arith.constant 0 : index
    %c0_38 = arith.constant 0 : index
    %222 = vector.load %arg7[%c0_37, %c0_38] : memref<1x128xf32, #tpu.memory_space<vmem>>, vector<1x128xf32>
    %223 = vector.broadcast %222 : vector<1x128xf32> to vector<2x128xf32>
    %224 = arith.addf %221, %223 : vector<2x128xf32>
    %225 = vector.extract_strided_slice %224 {offsets = [0, 0], sizes = [2, 96], strides = [1, 1]} : vector<2x128xf32> to vector<2x96xf32>
    %c0_39 = arith.constant 0 : index
    %c0_40 = arith.constant 0 : index
    %226 = vector.load %arg8[%c0_39, %c0_40] : memref<2x96xf32, #tpu.memory_space<vmem>>, vector<2x96xf32>
    tpu.vector_store %arg8[%c0_39, %c0_40], %225 {strides = array<i32>} : memref<2x96xf32, #tpu.memory_space<vmem>>, vector<2x96xf32>,
    return
  }
}

</mosaic_0001>

<llo_original>
// kernel: predictive_coding_gru.1
$region0: #{predictive_coding_gru.1}
  #allocation0 [shape = 'u32[]', space=smem, size = 0x4, offset = 0x4, fixed_abs, tag = 'smem constant byte address 0x4 - core index']
  #allocation1 [shape = 'u32[72,128]{1,0:T(1,128)}', space=vmem, size = 0x9000, scoped, tag = 'internal scratch']
  %s0 = inlined_call_operand.vmem [shape: f32[16,16], index: 0, kind: input, shape index: {}]
  %s1 = inlined_call_operand.vmem [shape: f32[16,1], index: 1, kind: input, shape index: {}]
  %s2 = inlined_call_operand.hbm [shape: f32[16,384], index: 2, kind: input, shape index: {}]
  %s3 = inlined_call_operand.hbm [shape: f32[128,384], index: 3, kind: input, shape index: {}]
  %s4 = inlined_call_operand.vmem [shape: f32[1,384], index: 4, kind: input, shape index: {}]
  %s5 = inlined_call_operand.vmem [shape: f32[1,128], index: 5, kind: input, shape index: {}]
  %s6 = inlined_call_operand.vmem [shape: f32[1,128], index: 6, kind: input, shape index: {}]
  %s7 = inlined_call_operand.vmem [shape: f32[1,128], index: 7, kind: input, shape index: {}]
  %s8 = inlined_call_operand.hbm [shape: f32[2,96], index: 8, kind: output, shape index: {}]
  %s9 = sld [smem:[#allocation0]]
  $region50: #{predictive_coding_gru.1} parent=0
    _
  %s11 = ssub.s32 1, %s9
  %s12 = scalar_select 0, %s11, %s9
  $region1: #{predictive_coding_gru.1} parent=0
    #allocation2 [shape = 'u8[24576]{0}', space=vmem, size = 0x6000, scoped, tag = 'input window, operand 2, single buffered']
    #allocation3 [shape = 's32[1]{0}', space=sflag, size = 0x4, scoped, tag = 'scoped memory for predictive_coding_gru.1']
    #allocation4 [shape = 's32[1]{0}', space=sflag, size = 0x4, scoped, tag = 'scoped memory for predictive_coding_gru.1']
    #allocation5 [shape = 'u8[196608]{0}', space=vmem, size = 0x30000, scoped, tag = 'input window, operand 3, single buffered']
    #allocation6 [shape = 's32[1]{0}', space=sflag, size = 0x4, scoped, tag = 'scoped memory for predictive_coding_gru.1']
    #allocation7 [shape = 'u8[1024]{0}', space=vmem, size = 0x400, scoped, tag = 'output window, operand 0, single buffered']
    %13 = vsyncpa [#allocation3], 0
    %14 = vsyncpa [#allocation6], 0
    %15 = vsyncpa [#allocation4], 0
    // Predicated region
    $region2: #{predictive_coding_gru.1} parent=1 // pred_check
      _
    $region3: #{predictive_coding_gru.1} parent=1 // pred_check_branch
      %17 = sbr.rel (0) target = $region5
    $region4: #{predictive_coding_gru.1} parent=1 // pred_region
      _
    $region5: #{predictive_coding_gru.1} parent=1 // pred_fallthru
      _
    // Predicated region
    $region6: #{predictive_coding_gru.1} parent=1 // pred_check
      _
    $region7: #{predictive_coding_gru.1} parent=1 // pred_check_branch
      %19 = sbr.rel (0) target = $region9
    $region8: #{predictive_coding_gru.1} parent=1 // pred_region
      _
    $region9: #{predictive_coding_gru.1} parent=1 // pred_fallthru
      _
    // Predicated region
    $region10: #{predictive_coding_gru.1} parent=1 // pred_check
      _
    $region11: #{predictive_coding_gru.1} parent=1 // pred_check_branch
      %21 = sbr.rel (0) target = $region13
    $region12: #{predictive_coding_gru.1} parent=1 // pred_region
      %23 = vsyncadd [#allocation3], 0
      %s24 = sshll.u32 %s2, 4
      %s25 = int_to_ptr.hbm [resolvable:$true] %s24
      %s26 = sshll.u32 [#allocation2], 4
      %s27 = int_to_ptr.vmem [resolvable:$true] %s26
      %32 = dma.hbm_to_vmem [thread:$0]  %s25, 768, %s27, [#allocation3], 384, 384, 24
    $region13: #{predictive_coding_gru.1} parent=1 // pred_fallthru
      _
    // Predicated region
    $region14: #{predictive_coding_gru.1} parent=1 // pred_check
      _
    $region15: #{predictive_coding_gru.1} parent=1 // pred_check_branch
      %34 = sbr.rel (0) target = $region17
    $region16: #{predictive_coding_gru.1} parent=1 // pred_region
      %36 = vsyncadd [#allocation6], 0
      %s37 = sshll.u32 %s3, 4
      %s38 = int_to_ptr.hbm [resolvable:$true] %s37
      %s39 = sshll.u32 [#allocation5], 4
      %s40 = int_to_ptr.vmem [resolvable:$true] %s39
      %45 = dma.hbm_to_vmem [thread:$0]  %s38, 6144, %s40, [#allocation6], 384, 384, 24
    $region17: #{predictive_coding_gru.1} parent=1 // pred_fallthru
      _
    // Predicated region
    $region18: #{predictive_coding_gru.1} parent=1 // pred_check
      _
    $region19: #{predictive_coding_gru.1} parent=1 // pred_check_branch
      %47 = sbr.rel (0) target = $region21
    $region20: #{predictive_coding_gru.1} parent=1 // pred_region
      _
    $region21: #{predictive_coding_gru.1} parent=1 // pred_fallthru
      _
    // Predicated region
    $region22: #{predictive_coding_gru.1} parent=1 // pred_check
      _
    $region23: #{predictive_coding_gru.1} parent=1 // pred_check_branch
      %49 = sbr.rel (0) target = $region25
    $region24: #{predictive_coding_gru.1} parent=1 // pred_region
      _
    $region25: #{predictive_coding_gru.1} parent=1 // pred_fallthru
      _
    // Predicated region
    $region26: #{predictive_coding_gru.1} parent=1 // pred_check
      _
    $region27: #{predictive_coding_gru.1} parent=1 // pred_check_branch
      %51 = sbr.rel (0) target = $region29
    $region28: #{predictive_coding_gru.1} parent=1 // pred_region
      _
    $region29: #{predictive_coding_gru.1} parent=1 // pred_fallthru
      _
    // Predicated region
    $region30: #{predictive_coding_gru.1} parent=1 // pred_check
      _
    $region31: #{predictive_coding_gru.1} parent=1 // pred_check_branch
      %53 = sbr.rel (0) target = $region33
    $region32: #{predictive_coding_gru.1} parent=1 // pred_region
      _
    $region33: #{predictive_coding_gru.1} parent=1 // pred_fallthru
      _
    // Predicated region
    $region34: #{predictive_coding_gru.1} parent=1 // pred_check
      _
    $region35: #{predictive_coding_gru.1} parent=1 // pred_check_branch
      %55 = sbr.rel (0) target = $region37
    $region36: #{predictive_coding_gru.1} parent=1 // pred_region
      %57 = dma.done [#allocation3], 768
    $region37: #{predictive_coding_gru.1} parent=1 // pred_fallthru
      _
    // Predicated region
    $region38: #{predictive_coding_gru.1} parent=1 // pred_check
      _
    $region39: #{predictive_coding_gru.1} parent=1 // pred_check_branch
      %59 = sbr.rel (0) target = $region41
    $region40: #{predictive_coding_gru.1} parent=1 // pred_region
      %61 = dma.done [#allocation6], 6144
    $region41: #{predictive_coding_gru.1} parent=1 // pred_fallthru
      _
    %v62 = vld [vmem:[%s0] sm:$0xff]
    %v63 = vld [vmem:[%s0 + $0x8] sm:$0xff]
    %v64 = vld [vmem:[%s1] sm:$0xff]
    %v65 = vld [vmem:[%s1 + $0x8] sm:$0xff]
    %v66 = vmul.f32 %v64, 0.3
    %v67 = vmul.f32 %v65, 0.3
    %v68 = vsub.f32 1.0, %v66
    %v69 = vsub.f32 1.0, %v67
    %71 = vset.pattern.permute.xlu0 0
    %72 = vperm.xlu0 %71, %v68
    %v73 = vpop.permute.xlu0 %72
    %76 = vset.pattern.permute.xlu0 0
    %77 = vperm.xlu0 %76, %v69
    %v78 = vpop.permute.xlu0 %77
    %v80 = vmul.f32 %v62, %v73
    %v81 = vmul.f32 %v63, %v78
    %v82 = vld [vmem:[#allocation2] sm:$0xff]
    %v83 = vld [vmem:[#allocation2 + $0x8] sm:$0xff]
    %v84 = vld [vmem:[#allocation2 + $0x10] sm:$0xff]
    %v85 = vld [vmem:[#allocation2 + $0x18] sm:$0xff]
    %v86 = vld [vmem:[#allocation2 + $0x20] sm:$0xff]
    %v87 = vld [vmem:[#allocation2 + $0x28] sm:$0xff]
    %v88 = vld [vmem:[%s4] sm:$0x7]
    %v90 = vperm.slane %v88, 0
    %v91 = vperm.slane %v88, 1
    %v92 = vperm.slane %v88, 2
    %vm96 = vcmask 130048
    %v98 = vsel %vm96, %v80, 0
    %v101 = vsel %vm96, %v81, 0
    %103 = vmatpush.msra.mxu0 0.0
    %104 = vmatpush.msra.mxu0 0.0
    %105 = vmatpush.msra.mxu0 0.0
    %106 = vmatpush.msra.mxu0 0.0
    %107 = vmatpush.msra.mxu0 0.0
    %108 = vmatpush.msra.mxu0 0.0
    %109 = vmatpush.msra.mxu0 0.0
    %110 = vmatpush.msra.mxu0 0.0
    %111 = vmatpush.msra.mxu0 0.0
    %112 = vmatpush.msra.mxu0 0.0
    %113 = vmatpush.msra.mxu0 0.0
    %114 = vmatpush.msra.mxu0 0.0
    %115 = vmatpush.msra.mxu0 0.0
    %116 = vmatpush.msra.mxu0 0.0
    %117 = vmatpush.msra.mxu0 %v85
    %118 = vmatpush.msra.mxu0 %v82
    %119 = vmatmul.f32.gmra.mxu0 %v98
    %v120 = vpop.f32.mrf.mxu0
    %v121 = vadd.f32 %v90, %v120
    %122 = vmatmul.f32.gmra.mxu0 %v101
    %v123 = vpop.f32.mrf.mxu0
    %v124 = vadd.f32 %v90, %v123
    %125 = vdwg.mxu0
    %126 = vmatpush.msra.mxu0 0.0
    %127 = vmatpush.msra.mxu0 0.0
    %128 = vmatpush.msra.mxu0 0.0
    %129 = vmatpush.msra.mxu0 0.0
    %130 = vmatpush.msra.mxu0 0.0
    %131 = vmatpush.msra.mxu0 0.0
    %132 = vmatpush.msra.mxu0 0.0
    %133 = vmatpush.msra.mxu0 0.0
    %134 = vmatpush.msra.mxu0 0.0
    %135 = vmatpush.msra.mxu0 0.0
    %136 = vmatpush.msra.mxu0 0.0
    %137 = vmatpush.msra.mxu0 0.0
    %138 = vmatpush.msra.mxu0 0.0
    %139 = vmatpush.msra.mxu0 0.0
    %140 = vmatpush.msra.mxu0 %v86
    %141 = vmatpush.msra.mxu0 %v83
    %142 = vmatmul.f32.gmra.mxu0 %v98
    %v143 = vpop.f32.mrf.mxu0
    %v144 = vadd.f32 %v91, %v143
    %145 = vmatmul.f32.gmra.mxu0 %v101
    %v146 = vpop.f32.mrf.mxu0
    %v147 = vadd.f32 %v91, %v146
    %148 = vdwg.mxu0
    %149 = vmatpush.msra.mxu0 0.0
    %150 = vmatpush.msra.mxu0 0.0
    %151 = vmatpush.msra.mxu0 0.0
    %152 = vmatpush.msra.mxu0 0.0
    %153 = vmatpush.msra.mxu0 0.0
    %154 = vmatpush.msra.mxu0 0.0
    %155 = vmatpush.msra.mxu0 0.0
    %156 = vmatpush.msra.mxu0 0.0
    %157 = vmatpush.msra.mxu0 0.0
    %158 = vmatpush.msra.mxu0 0.0
    %159 = vmatpush.msra.mxu0 0.0
    %160 = vmatpush.msra.mxu0 0.0
    %161 = vmatpush.msra.mxu0 0.0
    %162 = vmatpush.msra.mxu0 0.0
    %163 = vmatpush.msra.mxu0 %v87
    %164 = vmatpush.msra.mxu0 %v84
    %165 = vmatmul.f32.gmra.mxu0 %v98
    %v166 = vpop.f32.mrf.mxu0
    %v167 = vadd.f32 %v92, %v166
    %168 = vmatmul.f32.gmra.mxu0 %v101
    %v169 = vpop.f32.mrf.mxu0
    %v170 = vadd.f32 %v92, %v169
    %171 = vdwg.mxu0
    %v172 = vld [vmem:[%s5] sm:$0x1]
    %v173 = vld [vmem:[#allocation5] sm:$0xff]
    %v174 = vld [vmem:[#allocation5 + $0x8] sm:$0xff]
    %v175 = vld [vmem:[#allocation5 + $0x10] sm:$0xff]
    %v176 = vld [vmem:[#allocation5 + $0x18] sm:$0xff]
    %v177 = vld [vmem:[#allocation5 + $0x20] sm:$0xff]
    %v178 = vld [vmem:[#allocation5 + $0x28] sm:$0xff]
    %v179 = vld [vmem:[#allocation5 + $0x30] sm:$0xff]
    %v180 = vld [vmem:[#allocation5 + $0x38] sm:$0xff]
    %v181 = vld [vmem:[#allocation5 + $0x40] sm:$0xff]
    %v182 = vld [vmem:[#allocation5 + $0x48] sm:$0xff]
    %v183 = vld [vmem:[#allocation5 + $0x50] sm:$0xff]
    %v184 = vld [vmem:[#allocation5 + $0x58] sm:$0xff]
    %v185 = vld [vmem:[#allocation5 + $0x60] sm:$0xff]
    %v186 = vld [vmem:[#allocation5 + $0x68] sm:$0xff]
    %v187 = vld [vmem:[#allocation5 + $0x70] sm:$0xff]
    %v188 = vld [vmem:[#allocation5 + $0x78] sm:$0xff]
    %v189 = vld [vmem:[#allocation5 + $0x80] sm:$0xff]
    %v190 = vld [vmem:[#allocation5 + $0x88] sm:$0xff]
    %v191 = vld [vmem:[#allocation5 + $0x90] sm:$0xff]
    %v192 = vld [vmem:[#allocation5 + $0x98] sm:$0xff]
    %v193 = vld [vmem:[#allocation5 + $0xa0] sm:$0xff]
    %v194 = vld [vmem:[#allocation5 + $0xa8] sm:$0xff]
    %v195 = vld [vmem:[#allocation5 + $0xb0] sm:$0xff]
    %v196 = vld [vmem:[#allocation5 + $0xb8] sm:$0xff]
    %v197 = vld [vmem:[#allocation5 + $0xc0] sm:$0xff]
    %v198 = vld [vmem:[#allocation5 + $0xc8] sm:$0xff]
    %v199 = vld [vmem:[#allocation5 + $0xd0] sm:$0xff]
    %v200 = vld [vmem:[#allocation5 + $0xd8] sm:$0xff]
    %v201 = vld [vmem:[#allocation5 + $0xe0] sm:$0xff]
    %v202 = vld [vmem:[#allocation5 + $0xe8] sm:$0xff]
    %v203 = vld [vmem:[#allocation5 + $0xf0] sm:$0xff]
    %v204 = vld [vmem:[#allocation5 + $0xf8] sm:$0xff]
    %v205 = vld [vmem:[#allocation5 + $0x100] sm:$0xff]
    %v206 = vld [vmem:[#allocation5 + $0x108] sm:$0xff]
    %v207 = vld [vmem:[#allocation5 + $0x110] sm:$0xff]
    %v208 = vld [vmem:[#allocation5 + $0x118] sm:$0xff]
    %v209 = vld [vmem:[#allocation5 + $0x120] sm:$0xff]
    %v210 = vld [vmem:[#allocation5 + $0x128] sm:$0xff]
    %v211 = vld [vmem:[#allocation5 + $0x130] sm:$0xff]
    %v212 = vld [vmem:[#allocation5 + $0x138] sm:$0xff]
    %v213 = vld [vmem:[#allocation5 + $0x140] sm:$0xff]
    %v214 = vld [vmem:[#allocation5 + $0x148] sm:$0xff]
    %v215 = vld [vmem:[#allocation5 + $0x150] sm:$0xff]
    %v216 = vld [vmem:[#allocation5 + $0x158] sm:$0xff]
    %v217 = vld [vmem:[#allocation5 + $0x160] sm:$0xff]
    %v218 = vld [vmem:[#allocation5 + $0x168] sm:$0xff]
    %v219 = vld [vmem:[#allocation5 + $0x170] sm:$0xff]
    %v220 = vld [vmem:[#allocation5 + $0x178] sm:$0xff]
    %221 = vmatpush.msra.mxu0 %v218
    %222 = vmatpush.msra.mxu0 %v215
    %223 = vmatpush.msra.mxu0 %v212
    %224 = vmatpush.msra.mxu0 %v209
    %225 = vmatpush.msra.mxu0 %v206
    %226 = vmatpush.msra.mxu0 %v203
    %227 = vmatpush.msra.mxu0 %v200
    %228 = vmatpush.msra.mxu0 %v197
    %229 = vmatpush.msra.mxu0 %v194
    %230 = vmatpush.msra.mxu0 %v191
    %231 = vmatpush.msra.mxu0 %v188
    %232 = vmatpush.msra.mxu0 %v185
    %233 = vmatpush.msra.mxu0 %v182
    %234 = vmatpush.msra.mxu0 %v179
    %235 = vmatpush.msra.mxu0 %v176
    %236 = vmatpush.msra.mxu0 %v173
    %237 = vmatmul.f32.gmra.mxu0 0.0
    %v238 = vpop.f32.mrf.mxu0
    %v239 = vadd.f32 0.0, %v238
    %240 = vdwg.mxu0
    %241 = vmatpush.msra.mxu0 %v219
    %242 = vmatpush.msra.mxu0 %v216
    %243 = vmatpush.msra.mxu0 %v213
    %244 = vmatpush.msra.mxu0 %v210
    %245 = vmatpush.msra.mxu0 %v207
    %246 = vmatpush.msra.mxu0 %v204
    %247 = vmatpush.msra.mxu0 %v201
    %248 = vmatpush.msra.mxu0 %v198
    %249 = vmatpush.msra.mxu0 %v195
    %250 = vmatpush.msra.mxu0 %v192
    %251 = vmatpush.msra.mxu0 %v189
    %252 = vmatpush.msra.mxu0 %v186
    %253 = vmatpush.msra.mxu0 %v183
    %254 = vmatpush.msra.mxu0 %v180
    %255 = vmatpush.msra.mxu0 %v177
    %256 = vmatpush.msra.mxu0 %v174
    %257 = vmatmul.f32.gmra.mxu0 0.0
    %v258 = vpop.f32.mrf.mxu0
    %v259 = vadd.f32 0.0, %v258
    %260 = vdwg.mxu0
    %261 = vmatpush.msra.mxu0 %v220
    %262 = vmatpush.msra.mxu0 %v217
    %263 = vmatpush.msra.mxu0 %v214
    %264 = vmatpush.msra.mxu0 %v211
    %265 = vmatpush.msra.mxu0 %v208
    %266 = vmatpush.msra.mxu0 %v205
    %267 = vmatpush.msra.mxu0 %v202
    %268 = vmatpush.msra.mxu0 %v199
    %269 = vmatpush.msra.mxu0 %v196
    %270 = vmatpush.msra.mxu0 %v193
    %271 = vmatpush.msra.mxu0 %v190
    %272 = vmatpush.msra.mxu0 %v187
    %273 = vmatpush.msra.mxu0 %v184
    %274 = vmatpush.msra.mxu0 %v181
    %275 = vmatpush.msra.mxu0 %v178
    %276 = vmatpush.msra.mxu0 %v175
    %277 = vmatmul.f32.gmra.mxu0 0.0
    %v278 = vpop.f32.mrf.mxu0
    %v279 = vadd.f32 0.0, %v278
    %280 = vdwg.mxu0
    %v283 = vrot.slane %v239, 1
    %v284 = vrot.slane %v259, 1
    %v289 = vadd.f32 %v121, %v239
    %v290 = vadd.f32 %v144, %v259
    %v291 = vadd.f32 %v124, %v283
    %v292 = vadd.f32 %v147, %v284
    %v293 = vxor.u32 %v289, 2147483648
    %v294 = vxor.u32 %v290, 2147483648
    %v295 = vxor.u32 %v291, 2147483648
    %v296 = vxor.u32 %v292, 2147483648
    %v297 = vmul.f32 %v293, 1.442695
    %v298 = vpow.pop %v297
    %v299 = vmul.f32 %v294, 1.442695
    %v300 = vpow.pop %v299
    %v301 = vmul.f32 %v295, 1.442695
    %v302 = vpow.pop %v301
    %v303 = vmul.f32 %v296, 1.442695
    %v304 = vpow.pop %v303
    %v305 = vadd.f32 %v298, 1.0
    %v306 = vadd.f32 %v300, 1.0
    %v307 = vadd.f32 %v302, 1.0
    %v308 = vadd.f32 %v304, 1.0
    %v309 = vrcp.pop %v305
    %v310 = vmul.f32 %v305, %v309
    %v311 = vsub.f32 1.0, %v310
    %v312 = vmul.f32 %v309, %v311
    %v313 = vadd.f32 %v309, %v312
    %vm314 = vweird.f32 %v305
    %vm315 = vweird.f32 %v309
    %vm316 = vmor %vm314, %vm315
    %v317 = vsel %vm316, %v309, %v313
    %v318 = vand.u32 2147483647, %v305
    %vm319 = vcmp.eq.f32.partialorder %v318, 8.507059e+37
    %v320 = vand.u32 %v305, 2147483648
    %v321 = vor.u32 1.1754944e-38, %v320
    %v322 = vsel %vm319, %v321, %v317
    %v323 = vmul.f32 1.0, %v322
    %v324 = vrcp.pop %v306
    %v325 = vmul.f32 %v306, %v324
    %v326 = vsub.f32 1.0, %v325
    %v327 = vmul.f32 %v324, %v326
    %v328 = vadd.f32 %v324, %v327
    %vm329 = vweird.f32 %v306
    %vm330 = vweird.f32 %v324
    %vm331 = vmor %vm329, %vm330
    %v332 = vsel %vm331, %v324, %v328
    %v333 = vand.u32 2147483647, %v306
    %vm334 = vcmp.eq.f32.partialorder %v333, 8.507059e+37
    %v335 = vand.u32 %v306, 2147483648
    %v336 = vor.u32 1.1754944e-38, %v335
    %v337 = vsel %vm334, %v336, %v332
    %v338 = vmul.f32 1.0, %v337
    %v339 = vrcp.pop %v307
    %v340 = vmul.f32 %v307, %v339
    %v341 = vsub.f32 1.0, %v340
    %v342 = vmul.f32 %v339, %v341
    %v343 = vadd.f32 %v339, %v342
    %vm344 = vweird.f32 %v307
    %vm345 = vweird.f32 %v339
    %vm346 = vmor %vm344, %vm345
    %v347 = vsel %vm346, %v339, %v343
    %v348 = vand.u32 2147483647, %v307
    %vm349 = vcmp.eq.f32.partialorder %v348, 8.507059e+37
    %v350 = vand.u32 %v307, 2147483648
    %v351 = vor.u32 1.1754944e-38, %v350
    %v352 = vsel %vm349, %v351, %v347
    %v353 = vmul.f32 1.0, %v352
    %v354 = vrcp.pop %v308
    %v355 = vmul.f32 %v308, %v354
    %v356 = vsub.f32 1.0, %v355
    %v357 = vmul.f32 %v354, %v356
    %v358 = vadd.f32 %v354, %v357
    %vm359 = vweird.f32 %v308
    %vm360 = vweird.f32 %v354
    %vm361 = vmor %vm359, %vm360
    %v362 = vsel %vm361, %v354, %v358
    %v363 = vand.u32 2147483647, %v308
    %vm364 = vcmp.eq.f32.partialorder %v363, 8.507059e+37
    %v365 = vand.u32 %v308, 2147483648
    %v366 = vor.u32 1.1754944e-38, %v365
    %v367 = vsel %vm364, %v366, %v362
    %v368 = vmul.f32 1.0, %v367
    %v370 = vperm.slane %v172, 0
    %v372 = vadd.f32 %v279, %v370
    %v374 = vrot.slane %v372, 1
    %v377 = vmul.f32 %v323, %v372
    %v378 = vmul.f32 %v353, %v374
    %v379 = vadd.f32 %v167, %v377
    %v380 = vadd.f32 %v170, %v378
    %v381 = vtanh.pop %v379
    %v382 = vtanh.pop %v380
    %v383 = vsub.f32 0.0, %v381
    %v384 = vsub.f32 0.0, %v382
    %v385 = vmul.f32 %v338, %v383
    %v386 = vmul.f32 %v368, %v384
    %v387 = vadd.f32 %v381, %v385
    %v388 = vadd.f32 %v382, %v386
    %v391 = vrot.slane %v388, 7
    %vm392 = vcmask 1041409
    %v393 = vsel %vm392, %v391, %v387
    %395 = vmatpush.msra.mxu0 %v218
    %396 = vmatpush.msra.mxu0 %v215
    %397 = vmatpush.msra.mxu0 %v212
    %398 = vmatpush.msra.mxu0 %v209
    %399 = vmatpush.msra.mxu0 %v206
    %400 = vmatpush.msra.mxu0 %v203
    %401 = vmatpush.msra.mxu0 %v200
    %402 = vmatpush.msra.mxu0 %v197
    %403 = vmatpush.msra.mxu0 %v194
    %404 = vmatpush.msra.mxu0 %v191
    %405 = vmatpush.msra.mxu0 %v188
    %406 = vmatpush.msra.mxu0 %v185
    %407 = vmatpush.msra.mxu0 %v182
    %408 = vmatpush.msra.mxu0 %v179
    %409 = vmatpush.msra.mxu0 %v176
    %410 = vmatpush.msra.mxu0 %v173
    %411 = vmatmul.f32.gmra.mxu0 %v393
    %v412 = vpop.f32.mrf.mxu0
    %v413 = vadd.f32 0.0, %v412
    %414 = vdwg.mxu0
    %415 = vmatpush.msra.mxu0 %v219
    %416 = vmatpush.msra.mxu0 %v216
    %417 = vmatpush.msra.mxu0 %v213
    %418 = vmatpush.msra.mxu0 %v210
    %419 = vmatpush.msra.mxu0 %v207
    %420 = vmatpush.msra.mxu0 %v204
    %421 = vmatpush.msra.mxu0 %v201
    %422 = vmatpush.msra.mxu0 %v198
    %423 = vmatpush.msra.mxu0 %v195
    %424 = vmatpush.msra.mxu0 %v192
    %425 = vmatpush.msra.mxu0 %v189
    %426 = vmatpush.msra.mxu0 %v186
    %427 = vmatpush.msra.mxu0 %v183
    %428 = vmatpush.msra.mxu0 %v180
    %429 = vmatpush.msra.mxu0 %v177
    %430 = vmatpush.msra.mxu0 %v174
    %431 = vmatmul.f32.gmra.mxu0 %v393
    %v432 = vpop.f32.mrf.mxu0
    %v433 = vadd.f32 0.0, %v432
    %434 = vdwg.mxu0
    %435 = vmatpush.msra.mxu0 %v220
    %436 = vmatpush.msra.mxu0 %v217
    %437 = vmatpush.msra.mxu0 %v214
    %438 = vmatpush.msra.mxu0 %v211
    %439 = vmatpush.msra.mxu0 %v208
    %440 = vmatpush.msra.mxu0 %v205
    %441 = vmatpush.msra.mxu0 %v202
    %442 = vmatpush.msra.mxu0 %v199
    %443 = vmatpush.msra.mxu0 %v196
    %444 = vmatpush.msra.mxu0 %v193
    %445 = vmatpush.msra.mxu0 %v190
    %446 = vmatpush.msra.mxu0 %v187
    %447 = vmatpush.msra.mxu0 %v184
    %448 = vmatpush.msra.mxu0 %v181
    %449 = vmatpush.msra.mxu0 %v178
    %450 = vmatpush.msra.mxu0 %v175
    %451 = vmatmul.f32.gmra.mxu0 %v393
    %v452 = vpop.f32.mrf.mxu0
    %v453 = vadd.f32 0.0, %v452
    %454 = vdwg.mxu0
    %v457 = vrot.slane %v413, 7
    %v458 = vrot.slane %v433, 7
    %v463 = vadd.f32 %v121, %v457
    %v464 = vadd.f32 %v144, %v458
    %v465 = vadd.f32 %v124, %v413
    %v466 = vadd.f32 %v147, %v433
    %v467 = vxor.u32 %v463, 2147483648
    %v468 = vxor.u32 %v464, 2147483648
    %v469 = vxor.u32 %v465, 2147483648
    %v470 = vxor.u32 %v466, 2147483648
    %v471 = vmul.f32 %v467, 1.442695
    %v472 = vpow.pop %v471
    %v473 = vmul.f32 %v468, 1.442695
    %v474 = vpow.pop %v473
    %v475 = vmul.f32 %v469, 1.442695
    %v476 = vpow.pop %v475
    %v477 = vmul.f32 %v470, 1.442695
    %v478 = vpow.pop %v477
    %v479 = vadd.f32 %v472, 1.0
    %v480 = vadd.f32 %v474, 1.0
    %v481 = vadd.f32 %v476, 1.0
    %v482 = vadd.f32 %v478, 1.0
    %v483 = vrcp.pop %v479
    %v484 = vmul.f32 %v479, %v483
    %v485 = vsub.f32 1.0, %v484
    %v486 = vmul.f32 %v483, %v485
    %v487 = vadd.f32 %v483, %v486
    %vm488 = vweird.f32 %v479
    %vm489 = vweird.f32 %v483
    %vm490 = vmor %vm488, %vm489
    %v491 = vsel %vm490, %v483, %v487
    %v492 = vand.u32 2147483647, %v479
    %vm493 = vcmp.eq.f32.partialorder %v492, 8.507059e+37
    %v494 = vand.u32 %v479, 2147483648
    %v495 = vor.u32 1.1754944e-38, %v494
    %v496 = vsel %vm493, %v495, %v491
    %v497 = vmul.f32 1.0, %v496
    %v498 = vrcp.pop %v480
    %v499 = vmul.f32 %v480, %v498
    %v500 = vsub.f32 1.0, %v499
    %v501 = vmul.f32 %v498, %v500
    %v502 = vadd.f32 %v498, %v501
    %vm503 = vweird.f32 %v480
    %vm504 = vweird.f32 %v498
    %vm505 = vmor %vm503, %vm504
    %v506 = vsel %vm505, %v498, %v502
    %v507 = vand.u32 2147483647, %v480
    %vm508 = vcmp.eq.f32.partialorder %v507, 8.507059e+37
    %v509 = vand.u32 %v480, 2147483648
    %v510 = vor.u32 1.1754944e-38, %v509
    %v511 = vsel %vm508, %v510, %v506
    %v512 = vmul.f32 1.0, %v511
    %v513 = vrcp.pop %v481
    %v514 = vmul.f32 %v481, %v513
    %v515 = vsub.f32 1.0, %v514
    %v516 = vmul.f32 %v513, %v515
    %v517 = vadd.f32 %v513, %v516
    %vm518 = vweird.f32 %v481
    %vm519 = vweird.f32 %v513
    %vm520 = vmor %vm518, %vm519
    %v521 = vsel %vm520, %v513, %v517
    %v522 = vand.u32 2147483647, %v481
    %vm523 = vcmp.eq.f32.partialorder %v522, 8.507059e+37
    %v524 = vand.u32 %v481, 2147483648
    %v525 = vor.u32 1.1754944e-38, %v524
    %v526 = vsel %vm523, %v525, %v521
    %v527 = vmul.f32 1.0, %v526
    %v528 = vrcp.pop %v482
    %v529 = vmul.f32 %v482, %v528
    %v530 = vsub.f32 1.0, %v529
    %v531 = vmul.f32 %v528, %v530
    %v532 = vadd.f32 %v528, %v531
    %vm533 = vweird.f32 %v482
    %vm534 = vweird.f32 %v528
    %vm535 = vmor %vm533, %vm534
    %v536 = vsel %vm535, %v528, %v532
    %v537 = vand.u32 2147483647, %v482
    %vm538 = vcmp.eq.f32.partialorder %v537, 8.507059e+37
    %v539 = vand.u32 %v482, 2147483648
    %v540 = vor.u32 1.1754944e-38, %v539
    %v541 = vsel %vm538, %v540, %v536
    %v542 = vmul.f32 1.0, %v541
    %v543 = vadd.f32 %v453, %v370
    %v545 = vrot.slane %v543, 7
    %v548 = vmul.f32 %v497, %v545
    %v549 = vmul.f32 %v527, %v543
    %v550 = vadd.f32 %v167, %v548
    %v551 = vadd.f32 %v170, %v549
    %v552 = vtanh.pop %v550
    %v553 = vtanh.pop %v551
    %v556 = vrot.slane %v552, 1
    %v557 = vrot.slane %v553, 1
    %v560 = vsub.f32 %v387, %v556
    %v561 = vsub.f32 %v388, %v557
    %v564 = vrot.slane %v560, 7
    %v565 = vrot.slane %v561, 7
    %v568 = vmul.f32 %v512, %v564
    %v569 = vmul.f32 %v542, %v565
    %v570 = vadd.f32 %v552, %v568
    %v571 = vadd.f32 %v553, %v569
    %v574 = vrot.slane %v570, 1
    %v575 = vsel %vm392, %v571, %v574
    %577 = vmatpush.msra.mxu0 %v218
    %578 = vmatpush.msra.mxu0 %v215
    %579 = vmatpush.msra.mxu0 %v212
    %580 = vmatpush.msra.mxu0 %v209
    %581 = vmatpush.msra.mxu0 %v206
    %582 = vmatpush.msra.mxu0 %v203
    %583 = vmatpush.msra.mxu0 %v200
    %584 = vmatpush.msra.mxu0 %v197
    %585 = vmatpush.msra.mxu0 %v194
    %586 = vmatpush.msra.mxu0 %v191
    %587 = vmatpush.msra.mxu0 %v188
    %588 = vmatpush.msra.mxu0 %v185
    %589 = vmatpush.msra.mxu0 %v182
    %590 = vmatpush.msra.mxu0 %v179
    %591 = vmatpush.msra.mxu0 %v176
    %592 = vmatpush.msra.mxu0 %v173
    %593 = vmatmul.f32.gmra.mxu0 %v575
    %v594 = vpop.f32.mrf.mxu0
    %v595 = vadd.f32 0.0, %v594
    %596 = vdwg.mxu0
    %597 = vmatpush.msra.mxu0 %v219
    %598 = vmatpush.msra.mxu0 %v216
    %599 = vmatpush.msra.mxu0 %v213
    %600 = vmatpush.msra.mxu0 %v210
    %601 = vmatpush.msra.mxu0 %v207
    %602 = vmatpush.msra.mxu0 %v204
    %603 = vmatpush.msra.mxu0 %v201
    %604 = vmatpush.msra.mxu0 %v198
    %605 = vmatpush.msra.mxu0 %v195
    %606 = vmatpush.msra.mxu0 %v192
    %607 = vmatpush.msra.mxu0 %v189
    %608 = vmatpush.msra.mxu0 %v186
    %609 = vmatpush.msra.mxu0 %v183
    %610 = vmatpush.msra.mxu0 %v180
    %611 = vmatpush.msra.mxu0 %v177
    %612 = vmatpush.msra.mxu0 %v174
    %613 = vmatmul.f32.gmra.mxu0 %v575
    %v614 = vpop.f32.mrf.mxu0
    %v615 = vadd.f32 0.0, %v614
    %616 = vdwg.mxu0
    %617 = vmatpush.msra.mxu0 %v220
    %618 = vmatpush.msra.mxu0 %v217
    %619 = vmatpush.msra.mxu0 %v214
    %620 = vmatpush.msra.mxu0 %v211
    %621 = vmatpush.msra.mxu0 %v208
    %622 = vmatpush.msra.mxu0 %v205
    %623 = vmatpush.msra.mxu0 %v202
    %624 = vmatpush.msra.mxu0 %v199
    %625 = vmatpush.msra.mxu0 %v196
    %626 = vmatpush.msra.mxu0 %v193
    %627 = vmatpush.msra.mxu0 %v190
    %628 = vmatpush.msra.mxu0 %v187
    %629 = vmatpush.msra.mxu0 %v184
    %630 = vmatpush.msra.mxu0 %v181
    %631 = vmatpush.msra.mxu0 %v178
    %632 = vmatpush.msra.mxu0 %v175
    %633 = vmatmul.f32.gmra.mxu0 %v575
    %v634 = vpop.f32.mrf.mxu0
    %v635 = vadd.f32 0.0, %v634
    %636 = vdwg.mxu0
    %v639 = vrot.slane %v595, 6
    %v640 = vrot.slane %v615, 6
    %v641 = vrot.slane %v595, 7
    %v642 = vrot.slane %v615, 7
    %v647 = vadd.f32 %v121, %v639
    %v648 = vadd.f32 %v144, %v640
    %v649 = vadd.f32 %v124, %v641
    %v650 = vadd.f32 %v147, %v642
    %v651 = vxor.u32 %v647, 2147483648
    %v652 = vxor.u32 %v648, 2147483648
    %v653 = vxor.u32 %v649, 2147483648
    %v654 = vxor.u32 %v650, 2147483648
    %v655 = vmul.f32 %v651, 1.442695
    %v656 = vpow.pop %v655
    %v657 = vmul.f32 %v652, 1.442695
    %v658 = vpow.pop %v657
    %v659 = vmul.f32 %v653, 1.442695
    %v660 = vpow.pop %v659
    %v661 = vmul.f32 %v654, 1.442695
    %v662 = vpow.pop %v661
    %v663 = vadd.f32 %v656, 1.0
    %v664 = vadd.f32 %v658, 1.0
    %v665 = vadd.f32 %v660, 1.0
    %v666 = vadd.f32 %v662, 1.0
    %v667 = vrcp.pop %v663
    %v668 = vmul.f32 %v663, %v667
    %v669 = vsub.f32 1.0, %v668
    %v670 = vmul.f32 %v667, %v669
    %v671 = vadd.f32 %v667, %v670
    %vm672 = vweird.f32 %v663
    %vm673 = vweird.f32 %v667
    %vm674 = vmor %vm672, %vm673
    %v675 = vsel %vm674, %v667, %v671
    %v676 = vand.u32 2147483647, %v663
    %vm677 = vcmp.eq.f32.partialorder %v676, 8.507059e+37
    %v678 = vand.u32 %v663, 2147483648
    %v679 = vor.u32 1.1754944e-38, %v678
    %v680 = vsel %vm677, %v679, %v675
    %v681 = vmul.f32 1.0, %v680
    %v682 = vrcp.pop %v664
    %v683 = vmul.f32 %v664, %v682
    %v684 = vsub.f32 1.0, %v683
    %v685 = vmul.f32 %v682, %v684
    %v686 = vadd.f32 %v682, %v685
    %vm687 = vweird.f32 %v664
    %vm688 = vweird.f32 %v682
    %vm689 = vmor %vm687, %vm688
    %v690 = vsel %vm689, %v682, %v686
    %v691 = vand.u32 2147483647, %v664
    %vm692 = vcmp.eq.f32.partialorder %v691, 8.507059e+37
    %v693 = vand.u32 %v664, 2147483648
    %v694 = vor.u32 1.1754944e-38, %v693
    %v695 = vsel %vm692, %v694, %v690
    %v696 = vmul.f32 1.0, %v695
    %v697 = vrcp.pop %v665
    %v698 = vmul.f32 %v665, %v697
    %v699 = vsub.f32 1.0, %v698
    %v700 = vmul.f32 %v697, %v699
    %v701 = vadd.f32 %v697, %v700
    %vm702 = vweird.f32 %v665
    %vm703 = vweird.f32 %v697
    %vm704 = vmor %vm702, %vm703
    %v705 = vsel %vm704, %v697, %v701
    %v706 = vand.u32 2147483647, %v665
    %vm707 = vcmp.eq.f32.partialorder %v706, 8.507059e+37
    %v708 = vand.u32 %v665, 2147483648
    %v709 = vor.u32 1.1754944e-38, %v708
    %v710 = vsel %vm707, %v709, %v705
    %v711 = vmul.f32 1.0, %v710
    %v712 = vrcp.pop %v666
    %v713 = vmul.f32 %v666, %v712
    %v714 = vsub.f32 1.0, %v713
    %v715 = vmul.f32 %v712, %v714
    %v716 = vadd.f32 %v712, %v715
    %vm717 = vweird.f32 %v666
    %vm718 = vweird.f32 %v712
    %vm719 = vmor %vm717, %vm718
    %v720 = vsel %vm719, %v712, %v716
    %v721 = vand.u32 2147483647, %v666
    %vm722 = vcmp.eq.f32.partialorder %v721, 8.507059e+37
    %v723 = vand.u32 %v666, 2147483648
    %v724 = vor.u32 1.1754944e-38, %v723
    %v725 = vsel %vm722, %v724, %v720
    %v726 = vmul.f32 1.0, %v725
    %v727 = vadd.f32 %v635, %v370
    %v729 = vrot.slane %v727, 6
    %v730 = vrot.slane %v727, 7
    %v733 = vmul.f32 %v681, %v729
    %v734 = vmul.f32 %v711, %v730
    %v735 = vadd.f32 %v167, %v733
    %v736 = vadd.f32 %v170, %v734
    %v737 = vtanh.pop %v735
    %v738 = vtanh.pop %v736
    %v741 = vrot.slane %v737, 1
    %v742 = vrot.slane %v738, 1
    %v745 = vsub.f32 %v570, %v741
    %v746 = vsub.f32 %v571, %v742
    %v749 = vrot.slane %v745, 7
    %v750 = vrot.slane %v746, 7
    %v753 = vmul.f32 %v696, %v749
    %v754 = vmul.f32 %v726, %v750
    %v755 = vadd.f32 %v737, %v753
    %v756 = vadd.f32 %v738, %v754
    %v759 = vrot.slane %v755, 2
    %v760 = vrot.slane %v756, 1
    %v761 = vsel %vm392, %v760, %v759
    %763 = vmatpush.msra.mxu0 %v218
    %764 = vmatpush.msra.mxu0 %v215
    %765 = vmatpush.msra.mxu0 %v212
    %766 = vmatpush.msra.mxu0 %v209
    %767 = vmatpush.msra.mxu0 %v206
    %768 = vmatpush.msra.mxu0 %v203
    %769 = vmatpush.msra.mxu0 %v200
    %770 = vmatpush.msra.mxu0 %v197
    %771 = vmatpush.msra.mxu0 %v194
    %772 = vmatpush.msra.mxu0 %v191
    %773 = vmatpush.msra.mxu0 %v188
    %774 = vmatpush.msra.mxu0 %v185
    %775 = vmatpush.msra.mxu0 %v182
    %776 = vmatpush.msra.mxu0 %v179
    %777 = vmatpush.msra.mxu0 %v176
    %778 = vmatpush.msra.mxu0 %v173
    %779 = vmatmul.f32.gmra.mxu0 %v761
    %v780 = vpop.f32.mrf.mxu0
    %v781 = vadd.f32 0.0, %v780
    %782 = vdwg.mxu0
    %783 = vmatpush.msra.mxu0 %v219
    %784 = vmatpush.msra.mxu0 %v216
    %785 = vmatpush.msra.mxu0 %v213
    %786 = vmatpush.msra.mxu0 %v210
    %787 = vmatpush.msra.mxu0 %v207
    %788 = vmatpush.msra.mxu0 %v204
    %789 = vmatpush.msra.mxu0 %v201
    %790 = vmatpush.msra.mxu0 %v198
    %791 = vmatpush.msra.mxu0 %v195
    %792 = vmatpush.msra.mxu0 %v192
    %793 = vmatpush.msra.mxu0 %v189
    %794 = vmatpush.msra.mxu0 %v186
    %795 = vmatpush.msra.mxu0 %v183
    %796 = vmatpush.msra.mxu0 %v180
    %797 = vmatpush.msra.mxu0 %v177
    %798 = vmatpush.msra.mxu0 %v174
    %799 = vmatmul.f32.gmra.mxu0 %v761
    %v800 = vpop.f32.mrf.mxu0
    %v801 = vadd.f32 0.0, %v800
    %802 = vdwg.mxu0
    %803 = vmatpush.msra.mxu0 %v220
    %804 = vmatpush.msra.mxu0 %v217
    %805 = vmatpush.msra.mxu0 %v214
    %806 = vmatpush.msra.mxu0 %v211
    %807 = vmatpush.msra.mxu0 %v208
    %808 = vmatpush.msra.mxu0 %v205
    %809 = vmatpush.msra.mxu0 %v202
    %810 = vmatpush.msra.mxu0 %v199
    %811 = vmatpush.msra.mxu0 %v196
    %812 = vmatpush.msra.mxu0 %v193
    %813 = vmatpush.msra.mxu0 %v190
    %814 = vmatpush.msra.mxu0 %v187
    %815 = vmatpush.msra.mxu0 %v184
    %816 = vmatpush.msra.mxu0 %v181
    %817 = vmatpush.msra.mxu0 %v178
    %818 = vmatpush.msra.mxu0 %v175
    %819 = vmatmul.f32.gmra.mxu0 %v761
    %v820 = vpop.f32.mrf.mxu0
    %v821 = vadd.f32 0.0, %v820
    %822 = vdwg.mxu0
    %v825 = vrot.slane %v781, 5
    %v826 = vrot.slane %v801, 5
    %v827 = vrot.slane %v781, 6
    %v828 = vrot.slane %v801, 6
    %v833 = vadd.f32 %v121, %v825
    %v834 = vadd.f32 %v144, %v826
    %v835 = vadd.f32 %v124, %v827
    %v836 = vadd.f32 %v147, %v828
    %v837 = vxor.u32 %v833, 2147483648
    %v838 = vxor.u32 %v834, 2147483648
    %v839 = vxor.u32 %v835, 2147483648
    %v840 = vxor.u32 %v836, 2147483648
    %v841 = vmul.f32 %v837, 1.442695
    %v842 = vpow.pop %v841
    %v843 = vmul.f32 %v838, 1.442695
    %v844 = vpow.pop %v843
    %v845 = vmul.f32 %v839, 1.442695
    %v846 = vpow.pop %v845
    %v847 = vmul.f32 %v840, 1.442695
    %v848 = vpow.pop %v847
    %v849 = vadd.f32 %v842, 1.0
    %v850 = vadd.f32 %v844, 1.0
    %v851 = vadd.f32 %v846, 1.0
    %v852 = vadd.f32 %v848, 1.0
    %v853 = vrcp.pop %v849
    %v854 = vmul.f32 %v849, %v853
    %v855 = vsub.f32 1.0, %v854
    %v856 = vmul.f32 %v853, %v855
    %v857 = vadd.f32 %v853, %v856
    %vm858 = vweird.f32 %v849
    %vm859 = vweird.f32 %v853
    %vm860 = vmor %vm858, %vm859
    %v861 = vsel %vm860, %v853, %v857
    %v862 = vand.u32 2147483647, %v849
    %vm863 = vcmp.eq.f32.partialorder %v862, 8.507059e+37
    %v864 = vand.u32 %v849, 2147483648
    %v865 = vor.u32 1.1754944e-38, %v864
    %v866 = vsel %vm863, %v865, %v861
    %v867 = vmul.f32 1.0, %v866
    %v868 = vrcp.pop %v850
    %v869 = vmul.f32 %v850, %v868
    %v870 = vsub.f32 1.0, %v869
    %v871 = vmul.f32 %v868, %v870
    %v872 = vadd.f32 %v868, %v871
    %vm873 = vweird.f32 %v850
    %vm874 = vweird.f32 %v868
    %vm875 = vmor %vm873, %vm874
    %v876 = vsel %vm875, %v868, %v872
    %v877 = vand.u32 2147483647, %v850
    %vm878 = vcmp.eq.f32.partialorder %v877, 8.507059e+37
    %v879 = vand.u32 %v850, 2147483648
    %v880 = vor.u32 1.1754944e-38, %v879
    %v881 = vsel %vm878, %v880, %v876
    %v882 = vmul.f32 1.0, %v881
    %v883 = vrcp.pop %v851
    %v884 = vmul.f32 %v851, %v883
    %v885 = vsub.f32 1.0, %v884
    %v886 = vmul.f32 %v883, %v885
    %v887 = vadd.f32 %v883, %v886
    %vm888 = vweird.f32 %v851
    %vm889 = vweird.f32 %v883
    %vm890 = vmor %vm888, %vm889
    %v891 = vsel %vm890, %v883, %v887
    %v892 = vand.u32 2147483647, %v851
    %vm893 = vcmp.eq.f32.partialorder %v892, 8.507059e+37
    %v894 = vand.u32 %v851, 2147483648
    %v895 = vor.u32 1.1754944e-38, %v894
    %v896 = vsel %vm893, %v895, %v891
    %v897 = vmul.f32 1.0, %v896
    %v898 = vrcp.pop %v852
    %v899 = vmul.f32 %v852, %v898
    %v900 = vsub.f32 1.0, %v899
    %v901 = vmul.f32 %v898, %v900
    %v902 = vadd.f32 %v898, %v901
    %vm903 = vweird.f32 %v852
    %vm904 = vweird.f32 %v898
    %vm905 = vmor %vm903, %vm904
    %v906 = vsel %vm905, %v898, %v902
    %v907 = vand.u32 2147483647, %v852
    %vm908 = vcmp.eq.f32.partialorder %v907, 8.507059e+37
    %v909 = vand.u32 %v852, 2147483648
    %v910 = vor.u32 1.1754944e-38, %v909
    %v911 = vsel %vm908, %v910, %v906
    %v912 = vmul.f32 1.0, %v911
    %v913 = vadd.f32 %v821, %v370
    %v915 = vrot.slane %v913, 5
    %v916 = vrot.slane %v913, 6
    %v919 = vmul.f32 %v867, %v915
    %v920 = vmul.f32 %v897, %v916
    %v921 = vadd.f32 %v167, %v919
    %v922 = vadd.f32 %v170, %v920
    %v923 = vtanh.pop %v921
    %v924 = vtanh.pop %v922
    %v927 = vrot.slane %v923, 1
    %v928 = vrot.slane %v924, 1
    %v931 = vsub.f32 %v755, %v927
    %v932 = vsub.f32 %v756, %v928
    %v935 = vrot.slane %v931, 7
    %v936 = vrot.slane %v932, 7
    %v939 = vmul.f32 %v882, %v935
    %v940 = vmul.f32 %v912, %v936
    %v941 = vadd.f32 %v923, %v939
    %v942 = vadd.f32 %v924, %v940
    %v945 = vrot.slane %v941, 3
    %v946 = vrot.slane %v942, 2
    %v947 = vsel %vm392, %v946, %v945
    %949 = vmatpush.msra.mxu0 %v218
    %950 = vmatpush.msra.mxu0 %v215
    %951 = vmatpush.msra.mxu0 %v212
    %952 = vmatpush.msra.mxu0 %v209
    %953 = vmatpush.msra.mxu0 %v206
    %954 = vmatpush.msra.mxu0 %v203
    %955 = vmatpush.msra.mxu0 %v200
    %956 = vmatpush.msra.mxu0 %v197
    %957 = vmatpush.msra.mxu0 %v194
    %958 = vmatpush.msra.mxu0 %v191
    %959 = vmatpush.msra.mxu0 %v188
    %960 = vmatpush.msra.mxu0 %v185
    %961 = vmatpush.msra.mxu0 %v182
    %962 = vmatpush.msra.mxu0 %v179
    %963 = vmatpush.msra.mxu0 %v176
    %964 = vmatpush.msra.mxu0 %v173
    %965 = vmatmul.f32.gmra.mxu0 %v947
    %v966 = vpop.f32.mrf.mxu0
    %v967 = vadd.f32 0.0, %v966
    %968 = vdwg.mxu0
    %969 = vmatpush.msra.mxu0 %v219
    %970 = vmatpush.msra.mxu0 %v216
    %971 = vmatpush.msra.mxu0 %v213
    %972 = vmatpush.msra.mxu0 %v210
    %973 = vmatpush.msra.mxu0 %v207
    %974 = vmatpush.msra.mxu0 %v204
    %975 = vmatpush.msra.mxu0 %v201
    %976 = vmatpush.msra.mxu0 %v198
    %977 = vmatpush.msra.mxu0 %v195
    %978 = vmatpush.msra.mxu0 %v192
    %979 = vmatpush.msra.mxu0 %v189
    %980 = vmatpush.msra.mxu0 %v186
    %981 = vmatpush.msra.mxu0 %v183
    %982 = vmatpush.msra.mxu0 %v180
    %983 = vmatpush.msra.mxu0 %v177
    %984 = vmatpush.msra.mxu0 %v174
    %985 = vmatmul.f32.gmra.mxu0 %v947
    %v986 = vpop.f32.mrf.mxu0
    %v987 = vadd.f32 0.0, %v986
    %988 = vdwg.mxu0
    %989 = vmatpush.msra.mxu0 %v220
    %990 = vmatpush.msra.mxu0 %v217
    %991 = vmatpush.msra.mxu0 %v214
    %992 = vmatpush.msra.mxu0 %v211
    %993 = vmatpush.msra.mxu0 %v208
    %994 = vmatpush.msra.mxu0 %v205
    %995 = vmatpush.msra.mxu0 %v202
    %996 = vmatpush.msra.mxu0 %v199
    %997 = vmatpush.msra.mxu0 %v196
    %998 = vmatpush.msra.mxu0 %v193
    %999 = vmatpush.msra.mxu0 %v190
    %1000 = vmatpush.msra.mxu0 %v187
    %1001 = vmatpush.msra.mxu0 %v184
    %1002 = vmatpush.msra.mxu0 %v181
    %1003 = vmatpush.msra.mxu0 %v178
    %1004 = vmatpush.msra.mxu0 %v175
    %1005 = vmatmul.f32.gmra.mxu0 %v947
    %v1006 = vpop.f32.mrf.mxu0
    %v1007 = vadd.f32 0.0, %v1006
    %1008 = vdwg.mxu0
    %v1011 = vrot.slane %v967, 4
    %v1012 = vrot.slane %v987, 4
    %v1013 = vrot.slane %v967, 5
    %v1014 = vrot.slane %v987, 5
    %v1019 = vadd.f32 %v121, %v1011
    %v1020 = vadd.f32 %v144, %v1012
    %v1021 = vadd.f32 %v124, %v1013
    %v1022 = vadd.f32 %v147, %v1014
    %v1023 = vxor.u32 %v1019, 2147483648
    %v1024 = vxor.u32 %v1020, 2147483648
    %v1025 = vxor.u32 %v1021, 2147483648
    %v1026 = vxor.u32 %v1022, 2147483648
    %v1027 = vmul.f32 %v1023, 1.442695
    %v1028 = vpow.pop %v1027
    %v1029 = vmul.f32 %v1024, 1.442695
    %v1030 = vpow.pop %v1029
    %v1031 = vmul.f32 %v1025, 1.442695
    %v1032 = vpow.pop %v1031
    %v1033 = vmul.f32 %v1026, 1.442695
    %v1034 = vpow.pop %v1033
    %v1035 = vadd.f32 %v1028, 1.0
    %v1036 = vadd.f32 %v1030, 1.0
    %v1037 = vadd.f32 %v1032, 1.0
    %v1038 = vadd.f32 %v1034, 1.0
    %v1039 = vrcp.pop %v1035
    %v1040 = vmul.f32 %v1035, %v1039
    %v1041 = vsub.f32 1.0, %v1040
    %v1042 = vmul.f32 %v1039, %v1041
    %v1043 = vadd.f32 %v1039, %v1042
    %vm1044 = vweird.f32 %v1035
    %vm1045 = vweird.f32 %v1039
    %vm1046 = vmor %vm1044, %vm1045
    %v1047 = vsel %vm1046, %v1039, %v1043
    %v1048 = vand.u32 2147483647, %v1035
    %vm1049 = vcmp.eq.f32.partialorder %v1048, 8.507059e+37
    %v1050 = vand.u32 %v1035, 2147483648
    %v1051 = vor.u32 1.1754944e-38, %v1050
    %v1052 = vsel %vm1049, %v1051, %v1047
    %v1053 = vmul.f32 1.0, %v1052
    %v1054 = vrcp.pop %v1036
    %v1055 = vmul.f32 %v1036, %v1054
    %v1056 = vsub.f32 1.0, %v1055
    %v1057 = vmul.f32 %v1054, %v1056
    %v1058 = vadd.f32 %v1054, %v1057
    %vm1059 = vweird.f32 %v1036
    %vm1060 = vweird.f32 %v1054
    %vm1061 = vmor %vm1059, %vm1060
    %v1062 = vsel %vm1061, %v1054, %v1058
    %v1063 = vand.u32 2147483647, %v1036
    %vm1064 = vcmp.eq.f32.partialorder %v1063, 8.507059e+37
    %v1065 = vand.u32 %v1036, 2147483648
    %v1066 = vor.u32 1.1754944e-38, %v1065
    %v1067 = vsel %vm1064, %v1066, %v1062
    %v1068 = vmul.f32 1.0, %v1067
    %v1069 = vrcp.pop %v1037
    %v1070 = vmul.f32 %v1037, %v1069
    %v1071 = vsub.f32 1.0, %v1070
    %v1072 = vmul.f32 %v1069, %v1071
    %v1073 = vadd.f32 %v1069, %v1072
    %vm1074 = vweird.f32 %v1037
    %vm1075 = vweird.f32 %v1069
    %vm1076 = vmor %vm1074, %vm1075
    %v1077 = vsel %vm1076, %v1069, %v1073
    %v1078 = vand.u32 2147483647, %v1037
    %vm1079 = vcmp.eq.f32.partialorder %v1078, 8.507059e+37
    %v1080 = vand.u32 %v1037, 2147483648
    %v1081 = vor.u32 1.1754944e-38, %v1080
    %v1082 = vsel %vm1079, %v1081, %v1077
    %v1083 = vmul.f32 1.0, %v1082
    %v1084 = vrcp.pop %v1038
    %v1085 = vmul.f32 %v1038, %v1084
    %v1086 = vsub.f32 1.0, %v1085
    %v1087 = vmul.f32 %v1084, %v1086
    %v1088 = vadd.f32 %v1084, %v1087
    %vm1089 = vweird.f32 %v1038
    %vm1090 = vweird.f32 %v1084
    %vm1091 = vmor %vm1089, %vm1090
    %v1092 = vsel %vm1091, %v1084, %v1088
    %v1093 = vand.u32 2147483647, %v1038
    %vm1094 = vcmp.eq.f32.partialorder %v1093, 8.507059e+37
    %v1095 = vand.u32 %v1038, 2147483648
    %v1096 = vor.u32 1.1754944e-38, %v1095
    %v1097 = vsel %vm1094, %v1096, %v1092
    %v1098 = vmul.f32 1.0, %v1097
    %v1099 = vadd.f32 %v1007, %v370
    %v1101 = vrot.slane %v1099, 4
    %v1102 = vrot.slane %v1099, 5
    %v1105 = vmul.f32 %v1053, %v1101
    %v1106 = vmul.f32 %v1083, %v1102
    %v1107 = vadd.f32 %v167, %v1105
    %v1108 = vadd.f32 %v170, %v1106
    %v1109 = vtanh.pop %v1107
    %v1110 = vtanh.pop %v1108
    %v1113 = vrot.slane %v1109, 1
    %v1114 = vrot.slane %v1110, 1
    %v1117 = vsub.f32 %v941, %v1113
    %v1118 = vsub.f32 %v942, %v1114
    %v1121 = vrot.slane %v1117, 7
    %v1122 = vrot.slane %v1118, 7
    %v1125 = vmul.f32 %v1068, %v1121
    %v1126 = vmul.f32 %v1098, %v1122
    %v1127 = vadd.f32 %v1109, %v1125
    %v1128 = vadd.f32 %v1110, %v1126
    %v1131 = vrot.slane %v1127, 4
    %v1132 = vrot.slane %v1128, 3
    %v1133 = vsel %vm392, %v1132, %v1131
    %1135 = vmatpush.msra.mxu0 %v218
    %1136 = vmatpush.msra.mxu0 %v215
    %1137 = vmatpush.msra.mxu0 %v212
    %1138 = vmatpush.msra.mxu0 %v209
    %1139 = vmatpush.msra.mxu0 %v206
    %1140 = vmatpush.msra.mxu0 %v203
    %1141 = vmatpush.msra.mxu0 %v200
    %1142 = vmatpush.msra.mxu0 %v197
    %1143 = vmatpush.msra.mxu0 %v194
    %1144 = vmatpush.msra.mxu0 %v191
    %1145 = vmatpush.msra.mxu0 %v188
    %1146 = vmatpush.msra.mxu0 %v185
    %1147 = vmatpush.msra.mxu0 %v182
    %1148 = vmatpush.msra.mxu0 %v179
    %1149 = vmatpush.msra.mxu0 %v176
    %1150 = vmatpush.msra.mxu0 %v173
    %1151 = vmatmul.f32.gmra.mxu0 %v1133
    %v1152 = vpop.f32.mrf.mxu0
    %v1153 = vadd.f32 0.0, %v1152
    %1154 = vdwg.mxu0
    %1155 = vmatpush.msra.mxu0 %v219
    %1156 = vmatpush.msra.mxu0 %v216
    %1157 = vmatpush.msra.mxu0 %v213
    %1158 = vmatpush.msra.mxu0 %v210
    %1159 = vmatpush.msra.mxu0 %v207
    %1160 = vmatpush.msra.mxu0 %v204
    %1161 = vmatpush.msra.mxu0 %v201
    %1162 = vmatpush.msra.mxu0 %v198
    %1163 = vmatpush.msra.mxu0 %v195
    %1164 = vmatpush.msra.mxu0 %v192
    %1165 = vmatpush.msra.mxu0 %v189
    %1166 = vmatpush.msra.mxu0 %v186
    %1167 = vmatpush.msra.mxu0 %v183
    %1168 = vmatpush.msra.mxu0 %v180
    %1169 = vmatpush.msra.mxu0 %v177
    %1170 = vmatpush.msra.mxu0 %v174
    %1171 = vmatmul.f32.gmra.mxu0 %v1133
    %v1172 = vpop.f32.mrf.mxu0
    %v1173 = vadd.f32 0.0, %v1172
    %1174 = vdwg.mxu0
    %1175 = vmatpush.msra.mxu0 %v220
    %1176 = vmatpush.msra.mxu0 %v217
    %1177 = vmatpush.msra.mxu0 %v214
    %1178 = vmatpush.msra.mxu0 %v211
    %1179 = vmatpush.msra.mxu0 %v208
    %1180 = vmatpush.msra.mxu0 %v205
    %1181 = vmatpush.msra.mxu0 %v202
    %1182 = vmatpush.msra.mxu0 %v199
    %1183 = vmatpush.msra.mxu0 %v196
    %1184 = vmatpush.msra.mxu0 %v193
    %1185 = vmatpush.msra.mxu0 %v190
    %1186 = vmatpush.msra.mxu0 %v187
    %1187 = vmatpush.msra.mxu0 %v184
    %1188 = vmatpush.msra.mxu0 %v181
    %1189 = vmatpush.msra.mxu0 %v178
    %1190 = vmatpush.msra.mxu0 %v175
    %1191 = vmatmul.f32.gmra.mxu0 %v1133
    %v1192 = vpop.f32.mrf.mxu0
    %v1193 = vadd.f32 0.0, %v1192
    %1194 = vdwg.mxu0
    %v1197 = vrot.slane %v1153, 3
    %v1198 = vrot.slane %v1173, 3
    %v1199 = vrot.slane %v1153, 4
    %v1200 = vrot.slane %v1173, 4
    %v1205 = vadd.f32 %v121, %v1197
    %v1206 = vadd.f32 %v144, %v1198
    %v1207 = vadd.f32 %v124, %v1199
    %v1208 = vadd.f32 %v147, %v1200
    %v1209 = vxor.u32 %v1205, 2147483648
    %v1210 = vxor.u32 %v1206, 2147483648
    %v1211 = vxor.u32 %v1207, 2147483648
    %v1212 = vxor.u32 %v1208, 2147483648
    %v1213 = vmul.f32 %v1209, 1.442695
    %v1214 = vpow.pop %v1213
    %v1215 = vmul.f32 %v1210, 1.442695
    %v1216 = vpow.pop %v1215
    %v1217 = vmul.f32 %v1211, 1.442695
    %v1218 = vpow.pop %v1217
    %v1219 = vmul.f32 %v1212, 1.442695
    %v1220 = vpow.pop %v1219
    %v1221 = vadd.f32 %v1214, 1.0
    %v1222 = vadd.f32 %v1216, 1.0
    %v1223 = vadd.f32 %v1218, 1.0
    %v1224 = vadd.f32 %v1220, 1.0
    %v1225 = vrcp.pop %v1221
    %v1226 = vmul.f32 %v1221, %v1225
    %v1227 = vsub.f32 1.0, %v1226
    %v1228 = vmul.f32 %v1225, %v1227
    %v1229 = vadd.f32 %v1225, %v1228
    %vm1230 = vweird.f32 %v1221
    %vm1231 = vweird.f32 %v1225
    %vm1232 = vmor %vm1230, %vm1231
    %v1233 = vsel %vm1232, %v1225, %v1229
    %v1234 = vand.u32 2147483647, %v1221
    %vm1235 = vcmp.eq.f32.partialorder %v1234, 8.507059e+37
    %v1236 = vand.u32 %v1221, 2147483648
    %v1237 = vor.u32 1.1754944e-38, %v1236
    %v1238 = vsel %vm1235, %v1237, %v1233
    %v1239 = vmul.f32 1.0, %v1238
    %v1240 = vrcp.pop %v1222
    %v1241 = vmul.f32 %v1222, %v1240
    %v1242 = vsub.f32 1.0, %v1241
    %v1243 = vmul.f32 %v1240, %v1242
    %v1244 = vadd.f32 %v1240, %v1243
    %vm1245 = vweird.f32 %v1222
    %vm1246 = vweird.f32 %v1240
    %vm1247 = vmor %vm1245, %vm1246
    %v1248 = vsel %vm1247, %v1240, %v1244
    %v1249 = vand.u32 2147483647, %v1222
    %vm1250 = vcmp.eq.f32.partialorder %v1249, 8.507059e+37
    %v1251 = vand.u32 %v1222, 2147483648
    %v1252 = vor.u32 1.1754944e-38, %v1251
    %v1253 = vsel %vm1250, %v1252, %v1248
    %v1254 = vmul.f32 1.0, %v1253
    %v1255 = vrcp.pop %v1223
    %v1256 = vmul.f32 %v1223, %v1255
    %v1257 = vsub.f32 1.0, %v1256
    %v1258 = vmul.f32 %v1255, %v1257
    %v1259 = vadd.f32 %v1255, %v1258
    %vm1260 = vweird.f32 %v1223
    %vm1261 = vweird.f32 %v1255
    %vm1262 = vmor %vm1260, %vm1261
    %v1263 = vsel %vm1262, %v1255, %v1259
    %v1264 = vand.u32 2147483647, %v1223
    %vm1265 = vcmp.eq.f32.partialorder %v1264, 8.507059e+37
    %v1266 = vand.u32 %v1223, 2147483648
    %v1267 = vor.u32 1.1754944e-38, %v1266
    %v1268 = vsel %vm1265, %v1267, %v1263
    %v1269 = vmul.f32 1.0, %v1268
    %v1270 = vrcp.pop %v1224
    %v1271 = vmul.f32 %v1224, %v1270
    %v1272 = vsub.f32 1.0, %v1271
    %v1273 = vmul.f32 %v1270, %v1272
    %v1274 = vadd.f32 %v1270, %v1273
    %vm1275 = vweird.f32 %v1224
    %vm1276 = vweird.f32 %v1270
    %vm1277 = vmor %vm1275, %vm1276
    %v1278 = vsel %vm1277, %v1270, %v1274
    %v1279 = vand.u32 2147483647, %v1224
    %vm1280 = vcmp.eq.f32.partialorder %v1279, 8.507059e+37
    %v1281 = vand.u32 %v1224, 2147483648
    %v1282 = vor.u32 1.1754944e-38, %v1281
    %v1283 = vsel %vm1280, %v1282, %v1278
    %v1284 = vmul.f32 1.0, %v1283
    %v1285 = vadd.f32 %v1193, %v370
    %v1287 = vrot.slane %v1285, 3
    %v1288 = vrot.slane %v1285, 4
    %v1291 = vmul.f32 %v1239, %v1287
    %v1292 = vmul.f32 %v1269, %v1288
    %v1293 = vadd.f32 %v167, %v1291
    %v1294 = vadd.f32 %v170, %v1292
    %v1295 = vtanh.pop %v1293
    %v1296 = vtanh.pop %v1294
    %v1299 = vrot.slane %v1295, 1
    %v1300 = vrot.slane %v1296, 1
    %v1303 = vsub.f32 %v1127, %v1299
    %v1304 = vsub.f32 %v1128, %v1300
    %v1307 = vrot.slane %v1303, 7
    %v1308 = vrot.slane %v1304, 7
    %v1311 = vmul.f32 %v1254, %v1307
    %v1312 = vmul.f32 %v1284, %v1308
    %v1313 = vadd.f32 %v1295, %v1311
    %v1314 = vadd.f32 %v1296, %v1312
    %v1317 = vrot.slane %v1313, 5
    %v1318 = vrot.slane %v1314, 4
    %v1319 = vsel %vm392, %v1318, %v1317
    %1321 = vmatpush.msra.mxu0 %v218
    %1322 = vmatpush.msra.mxu0 %v215
    %1323 = vmatpush.msra.mxu0 %v212
    %1324 = vmatpush.msra.mxu0 %v209
    %1325 = vmatpush.msra.mxu0 %v206
    %1326 = vmatpush.msra.mxu0 %v203
    %1327 = vmatpush.msra.mxu0 %v200
    %1328 = vmatpush.msra.mxu0 %v197
    %1329 = vmatpush.msra.mxu0 %v194
    %1330 = vmatpush.msra.mxu0 %v191
    %1331 = vmatpush.msra.mxu0 %v188
    %1332 = vmatpush.msra.mxu0 %v185
    %1333 = vmatpush.msra.mxu0 %v182
    %1334 = vmatpush.msra.mxu0 %v179
    %1335 = vmatpush.msra.mxu0 %v176
    %1336 = vmatpush.msra.mxu0 %v173
    %1337 = vmatmul.f32.gmra.mxu0 %v1319
    %v1338 = vpop.f32.mrf.mxu0
    %v1339 = vadd.f32 0.0, %v1338
    %1340 = vdwg.mxu0
    %1341 = vmatpush.msra.mxu0 %v219
    %1342 = vmatpush.msra.mxu0 %v216
    %1343 = vmatpush.msra.mxu0 %v213
    %1344 = vmatpush.msra.mxu0 %v210
    %1345 = vmatpush.msra.mxu0 %v207
    %1346 = vmatpush.msra.mxu0 %v204
    %1347 = vmatpush.msra.mxu0 %v201
    %1348 = vmatpush.msra.mxu0 %v198
    %1349 = vmatpush.msra.mxu0 %v195
    %1350 = vmatpush.msra.mxu0 %v192
    %1351 = vmatpush.msra.mxu0 %v189
    %1352 = vmatpush.msra.mxu0 %v186
    %1353 = vmatpush.msra.mxu0 %v183
    %1354 = vmatpush.msra.mxu0 %v180
    %1355 = vmatpush.msra.mxu0 %v177
    %1356 = vmatpush.msra.mxu0 %v174
    %1357 = vmatmul.f32.gmra.mxu0 %v1319
    %v1358 = vpop.f32.mrf.mxu0
    %v1359 = vadd.f32 0.0, %v1358
    %1360 = vdwg.mxu0
    %1361 = vmatpush.msra.mxu0 %v220
    %1362 = vmatpush.msra.mxu0 %v217
    %1363 = vmatpush.msra.mxu0 %v214
    %1364 = vmatpush.msra.mxu0 %v211
    %1365 = vmatpush.msra.mxu0 %v208
    %1366 = vmatpush.msra.mxu0 %v205
    %1367 = vmatpush.msra.mxu0 %v202
    %1368 = vmatpush.msra.mxu0 %v199
    %1369 = vmatpush.msra.mxu0 %v196
    %1370 = vmatpush.msra.mxu0 %v193
    %1371 = vmatpush.msra.mxu0 %v190
    %1372 = vmatpush.msra.mxu0 %v187
    %1373 = vmatpush.msra.mxu0 %v184
    %1374 = vmatpush.msra.mxu0 %v181
    %1375 = vmatpush.msra.mxu0 %v178
    %1376 = vmatpush.msra.mxu0 %v175
    %1377 = vmatmul.f32.gmra.mxu0 %v1319
    %v1378 = vpop.f32.mrf.mxu0
    %v1379 = vadd.f32 0.0, %v1378
    %1380 = vdwg.mxu0
    %v1383 = vrot.slane %v1339, 2
    %v1384 = vrot.slane %v1359, 2
    %v1385 = vrot.slane %v1339, 3
    %v1386 = vrot.slane %v1359, 3
    %v1391 = vadd.f32 %v121, %v1383
    %v1392 = vadd.f32 %v144, %v1384
    %v1393 = vadd.f32 %v124, %v1385
    %v1394 = vadd.f32 %v147, %v1386
    %v1395 = vxor.u32 %v1391, 2147483648
    %v1396 = vxor.u32 %v1392, 2147483648
    %v1397 = vxor.u32 %v1393, 2147483648
    %v1398 = vxor.u32 %v1394, 2147483648
    %v1399 = vmul.f32 %v1395, 1.442695
    %v1400 = vpow.pop %v1399
    %v1401 = vmul.f32 %v1396, 1.442695
    %v1402 = vpow.pop %v1401
    %v1403 = vmul.f32 %v1397, 1.442695
    %v1404 = vpow.pop %v1403
    %v1405 = vmul.f32 %v1398, 1.442695
    %v1406 = vpow.pop %v1405
    %v1407 = vadd.f32 %v1400, 1.0
    %v1408 = vadd.f32 %v1402, 1.0
    %v1409 = vadd.f32 %v1404, 1.0
    %v1410 = vadd.f32 %v1406, 1.0
    %v1411 = vrcp.pop %v1407
    %v1412 = vmul.f32 %v1407, %v1411
    %v1413 = vsub.f32 1.0, %v1412
    %v1414 = vmul.f32 %v1411, %v1413
    %v1415 = vadd.f32 %v1411, %v1414
    %vm1416 = vweird.f32 %v1407
    %vm1417 = vweird.f32 %v1411
    %vm1418 = vmor %vm1416, %vm1417
    %v1419 = vsel %vm1418, %v1411, %v1415
    %v1420 = vand.u32 2147483647, %v1407
    %vm1421 = vcmp.eq.f32.partialorder %v1420, 8.507059e+37
    %v1422 = vand.u32 %v1407, 2147483648
    %v1423 = vor.u32 1.1754944e-38, %v1422
    %v1424 = vsel %vm1421, %v1423, %v1419
    %v1425 = vmul.f32 1.0, %v1424
    %v1426 = vrcp.pop %v1408
    %v1427 = vmul.f32 %v1408, %v1426
    %v1428 = vsub.f32 1.0, %v1427
    %v1429 = vmul.f32 %v1426, %v1428
    %v1430 = vadd.f32 %v1426, %v1429
    %vm1431 = vweird.f32 %v1408
    %vm1432 = vweird.f32 %v1426
    %vm1433 = vmor %vm1431, %vm1432
    %v1434 = vsel %vm1433, %v1426, %v1430
    %v1435 = vand.u32 2147483647, %v1408
    %vm1436 = vcmp.eq.f32.partialorder %v1435, 8.507059e+37
    %v1437 = vand.u32 %v1408, 2147483648
    %v1438 = vor.u32 1.1754944e-38, %v1437
    %v1439 = vsel %vm1436, %v1438, %v1434
    %v1440 = vmul.f32 1.0, %v1439
    %v1441 = vrcp.pop %v1409
    %v1442 = vmul.f32 %v1409, %v1441
    %v1443 = vsub.f32 1.0, %v1442
    %v1444 = vmul.f32 %v1441, %v1443
    %v1445 = vadd.f32 %v1441, %v1444
    %vm1446 = vweird.f32 %v1409
    %vm1447 = vweird.f32 %v1441
    %vm1448 = vmor %vm1446, %vm1447
    %v1449 = vsel %vm1448, %v1441, %v1445
    %v1450 = vand.u32 2147483647, %v1409
    %vm1451 = vcmp.eq.f32.partialorder %v1450, 8.507059e+37
    %v1452 = vand.u32 %v1409, 2147483648
    %v1453 = vor.u32 1.1754944e-38, %v1452
    %v1454 = vsel %vm1451, %v1453, %v1449
    %v1455 = vmul.f32 1.0, %v1454
    %v1456 = vrcp.pop %v1410
    %v1457 = vmul.f32 %v1410, %v1456
    %v1458 = vsub.f32 1.0, %v1457
    %v1459 = vmul.f32 %v1456, %v1458
    %v1460 = vadd.f32 %v1456, %v1459
    %vm1461 = vweird.f32 %v1410
    %vm1462 = vweird.f32 %v1456
    %vm1463 = vmor %vm1461, %vm1462
    %v1464 = vsel %vm1463, %v1456, %v1460
    %v1465 = vand.u32 2147483647, %v1410
    %vm1466 = vcmp.eq.f32.partialorder %v1465, 8.507059e+37
    %v1467 = vand.u32 %v1410, 2147483648
    %v1468 = vor.u32 1.1754944e-38, %v1467
    %v1469 = vsel %vm1466, %v1468, %v1464
    %v1470 = vmul.f32 1.0, %v1469
    %v1471 = vadd.f32 %v1379, %v370
    %v1473 = vrot.slane %v1471, 2
    %v1474 = vrot.slane %v1471, 3
    %v1477 = vmul.f32 %v1425, %v1473
    %v1478 = vmul.f32 %v1455, %v1474
    %v1479 = vadd.f32 %v167, %v1477
    %v1480 = vadd.f32 %v170, %v1478
    %v1481 = vtanh.pop %v1479
    %v1482 = vtanh.pop %v1480
    %v1485 = vrot.slane %v1481, 1
    %v1486 = vrot.slane %v1482, 1
    %v1489 = vsub.f32 %v1313, %v1485
    %v1490 = vsub.f32 %v1314, %v1486
    %v1493 = vrot.slane %v1489, 7
    %v1494 = vrot.slane %v1490, 7
    %v1497 = vmul.f32 %v1440, %v1493
    %v1498 = vmul.f32 %v1470, %v1494
    %v1499 = vadd.f32 %v1481, %v1497
    %v1500 = vadd.f32 %v1482, %v1498
    %v1503 = vrot.slane %v1499, 6
    %v1504 = vrot.slane %v1500, 5
    %v1505 = vsel %vm392, %v1504, %v1503
    %1507 = vmatpush.msra.mxu0 %v218
    %1508 = vmatpush.msra.mxu0 %v215
    %1509 = vmatpush.msra.mxu0 %v212
    %1510 = vmatpush.msra.mxu0 %v209
    %1511 = vmatpush.msra.mxu0 %v206
    %1512 = vmatpush.msra.mxu0 %v203
    %1513 = vmatpush.msra.mxu0 %v200
    %1514 = vmatpush.msra.mxu0 %v197
    %1515 = vmatpush.msra.mxu0 %v194
    %1516 = vmatpush.msra.mxu0 %v191
    %1517 = vmatpush.msra.mxu0 %v188
    %1518 = vmatpush.msra.mxu0 %v185
    %1519 = vmatpush.msra.mxu0 %v182
    %1520 = vmatpush.msra.mxu0 %v179
    %1521 = vmatpush.msra.mxu0 %v176
    %1522 = vmatpush.msra.mxu0 %v173
    %1523 = vmatmul.f32.gmra.mxu0 %v1505
    %v1524 = vpop.f32.mrf.mxu0
    %v1525 = vadd.f32 0.0, %v1524
    %1526 = vdwg.mxu0
    %1527 = vmatpush.msra.mxu0 %v219
    %1528 = vmatpush.msra.mxu0 %v216
    %1529 = vmatpush.msra.mxu0 %v213
    %1530 = vmatpush.msra.mxu0 %v210
    %1531 = vmatpush.msra.mxu0 %v207
    %1532 = vmatpush.msra.mxu0 %v204
    %1533 = vmatpush.msra.mxu0 %v201
    %1534 = vmatpush.msra.mxu0 %v198
    %1535 = vmatpush.msra.mxu0 %v195
    %1536 = vmatpush.msra.mxu0 %v192
    %1537 = vmatpush.msra.mxu0 %v189
    %1538 = vmatpush.msra.mxu0 %v186
    %1539 = vmatpush.msra.mxu0 %v183
    %1540 = vmatpush.msra.mxu0 %v180
    %1541 = vmatpush.msra.mxu0 %v177
    %1542 = vmatpush.msra.mxu0 %v174
    %1543 = vmatmul.f32.gmra.mxu0 %v1505
    %v1544 = vpop.f32.mrf.mxu0
    %v1545 = vadd.f32 0.0, %v1544
    %1546 = vdwg.mxu0
    %1547 = vmatpush.msra.mxu0 %v220
    %1548 = vmatpush.msra.mxu0 %v217
    %1549 = vmatpush.msra.mxu0 %v214
    %1550 = vmatpush.msra.mxu0 %v211
    %1551 = vmatpush.msra.mxu0 %v208
    %1552 = vmatpush.msra.mxu0 %v205
    %1553 = vmatpush.msra.mxu0 %v202
    %1554 = vmatpush.msra.mxu0 %v199
    %1555 = vmatpush.msra.mxu0 %v196
    %1556 = vmatpush.msra.mxu0 %v193
    %1557 = vmatpush.msra.mxu0 %v190
    %1558 = vmatpush.msra.mxu0 %v187
    %1559 = vmatpush.msra.mxu0 %v184
    %1560 = vmatpush.msra.mxu0 %v181
    %1561 = vmatpush.msra.mxu0 %v178
    %1562 = vmatpush.msra.mxu0 %v175
    %1563 = vmatmul.f32.gmra.mxu0 %v1505
    %v1564 = vpop.f32.mrf.mxu0
    %v1565 = vadd.f32 0.0, %v1564
    %1566 = vdwg.mxu0
    %v1569 = vrot.slane %v1525, 1
    %v1570 = vrot.slane %v1545, 1
    %v1571 = vrot.slane %v1525, 2
    %v1572 = vrot.slane %v1545, 2
    %v1577 = vadd.f32 %v121, %v1569
    %v1578 = vadd.f32 %v144, %v1570
    %v1579 = vadd.f32 %v124, %v1571
    %v1580 = vadd.f32 %v147, %v1572
    %v1581 = vxor.u32 %v1577, 2147483648
    %v1582 = vxor.u32 %v1578, 2147483648
    %v1583 = vxor.u32 %v1579, 2147483648
    %v1584 = vxor.u32 %v1580, 2147483648
    %v1585 = vmul.f32 %v1581, 1.442695
    %v1586 = vpow.pop %v1585
    %v1587 = vmul.f32 %v1582, 1.442695
    %v1588 = vpow.pop %v1587
    %v1589 = vmul.f32 %v1583, 1.442695
    %v1590 = vpow.pop %v1589
    %v1591 = vmul.f32 %v1584, 1.442695
    %v1592 = vpow.pop %v1591
    %v1593 = vadd.f32 %v1586, 1.0
    %v1594 = vadd.f32 %v1588, 1.0
    %v1595 = vadd.f32 %v1590, 1.0
    %v1596 = vadd.f32 %v1592, 1.0
    %v1597 = vrcp.pop %v1593
    %v1598 = vmul.f32 %v1593, %v1597
    %v1599 = vsub.f32 1.0, %v1598
    %v1600 = vmul.f32 %v1597, %v1599
    %v1601 = vadd.f32 %v1597, %v1600
    %vm1602 = vweird.f32 %v1593
    %vm1603 = vweird.f32 %v1597
    %vm1604 = vmor %vm1602, %vm1603
    %v1605 = vsel %vm1604, %v1597, %v1601
    %v1606 = vand.u32 2147483647, %v1593
    %vm1607 = vcmp.eq.f32.partialorder %v1606, 8.507059e+37
    %v1608 = vand.u32 %v1593, 2147483648
    %v1609 = vor.u32 1.1754944e-38, %v1608
    %v1610 = vsel %vm1607, %v1609, %v1605
    %v1611 = vmul.f32 1.0, %v1610
    %v1612 = vrcp.pop %v1594
    %v1613 = vmul.f32 %v1594, %v1612
    %v1614 = vsub.f32 1.0, %v1613
    %v1615 = vmul.f32 %v1612, %v1614
    %v1616 = vadd.f32 %v1612, %v1615
    %vm1617 = vweird.f32 %v1594
    %vm1618 = vweird.f32 %v1612
    %vm1619 = vmor %vm1617, %vm1618
    %v1620 = vsel %vm1619, %v1612, %v1616
    %v1621 = vand.u32 2147483647, %v1594
    %vm1622 = vcmp.eq.f32.partialorder %v1621, 8.507059e+37
    %v1623 = vand.u32 %v1594, 2147483648
    %v1624 = vor.u32 1.1754944e-38, %v1623
    %v1625 = vsel %vm1622, %v1624, %v1620
    %v1626 = vmul.f32 1.0, %v1625
    %v1627 = vrcp.pop %v1595
    %v1628 = vmul.f32 %v1595, %v1627
    %v1629 = vsub.f32 1.0, %v1628
    %v1630 = vmul.f32 %v1627, %v1629
    %v1631 = vadd.f32 %v1627, %v1630
    %vm1632 = vweird.f32 %v1595
    %vm1633 = vweird.f32 %v1627
    %vm1634 = vmor %vm1632, %vm1633
    %v1635 = vsel %vm1634, %v1627, %v1631
    %v1636 = vand.u32 2147483647, %v1595
    %vm1637 = vcmp.eq.f32.partialorder %v1636, 8.507059e+37
    %v1638 = vand.u32 %v1595, 2147483648
    %v1639 = vor.u32 1.1754944e-38, %v1638
    %v1640 = vsel %vm1637, %v1639, %v1635
    %v1641 = vmul.f32 1.0, %v1640
    %v1642 = vrcp.pop %v1596
    %v1643 = vmul.f32 %v1596, %v1642
    %v1644 = vsub.f32 1.0, %v1643
    %v1645 = vmul.f32 %v1642, %v1644
    %v1646 = vadd.f32 %v1642, %v1645
    %vm1647 = vweird.f32 %v1596
    %vm1648 = vweird.f32 %v1642
    %vm1649 = vmor %vm1647, %vm1648
    %v1650 = vsel %vm1649, %v1642, %v1646
    %v1651 = vand.u32 2147483647, %v1596
    %vm1652 = vcmp.eq.f32.partialorder %v1651, 8.507059e+37
    %v1653 = vand.u32 %v1596, 2147483648
    %v1654 = vor.u32 1.1754944e-38, %v1653
    %v1655 = vsel %vm1652, %v1654, %v1650
    %v1656 = vmul.f32 1.0, %v1655
    %v1657 = vadd.f32 %v1565, %v370
    %v1659 = vrot.slane %v1657, 1
    %v1660 = vrot.slane %v1657, 2
    %v1663 = vmul.f32 %v1611, %v1659
    %v1664 = vmul.f32 %v1641, %v1660
    %v1665 = vadd.f32 %v167, %v1663
    %v1666 = vadd.f32 %v170, %v1664
    %v1667 = vtanh.pop %v1665
    %v1668 = vtanh.pop %v1666
    %v1671 = vrot.slane %v1667, 1
    %v1672 = vrot.slane %v1668, 1
    %v1675 = vsub.f32 %v1499, %v1671
    %v1676 = vsub.f32 %v1500, %v1672
    %v1679 = vrot.slane %v1675, 7
    %v1680 = vrot.slane %v1676, 7
    %v1683 = vmul.f32 %v1626, %v1679
    %v1684 = vmul.f32 %v1656, %v1680
    %v1685 = vadd.f32 %v1667, %v1683
    %v1686 = vadd.f32 %v1668, %v1684
    %v1689 = vrot.slane %v1686, 7
    %vm1692 = vcmask 1047559
    %v1693 = vsel %vm1692, %v1685, 0.0
    %1694 = vadd.xlane.f32.xlu0 %v1693
    %v1695 = vpop.xlane.xlu0 %1694
    %vm1696 = vcmask 1040384
    %v1697 = vsel %vm1696, %v1689, 0.0
    %1698 = vadd.xlane.f32.xlu0 %v1697
    %v1699 = vpop.xlane.xlu0 %1698
    %v1700 = vmul.f32 %v1695, 0.010416667
    %v1701 = vmul.f32 %v1699, 0.010416667
    %v1702 = vmul.f32 %v1685, %v1685
    %v1703 = vmul.f32 %v1686, %v1686
    %v1706 = vrot.slane %v1703, 7
    %v1709 = vsel %vm1692, %v1702, 0.0
    %1710 = vadd.xlane.f32.xlu0 %v1709
    %v1711 = vpop.xlane.xlu0 %1710
    %v1712 = vsel %vm1696, %v1706, 0.0
    %1713 = vadd.xlane.f32.xlu0 %v1712
    %v1714 = vpop.xlane.xlu0 %1713
    %v1715 = vmul.f32 %v1711, 0.010416667
    %v1716 = vmul.f32 %v1714, 0.010416667
    %v1717 = vmul.f32 %v1700, %v1700
    %v1718 = vmul.f32 %v1701, %v1701
    %v1719 = vsub.f32 %v1715, %v1717
    %v1720 = vsub.f32 %v1716, %v1718
    %v1721 = vadd.f32 %v1719, 1e-05
    %v1722 = vadd.f32 %v1720, 1e-05
    %v1723 = vrsqrt.pop %v1721
    %v1724 = vmul.f32 %v1723, %v1721
    %v1725 = vmul.f32 %v1724, %v1723
    %v1726 = vmul.f32 0.5, %v1725
    %v1727 = vsub.f32 1.5, %v1726
    %v1728 = vmul.f32 %v1723, %v1727
    %vm1729 = vweird.f32 %v1721
    %vm1730 = vweird.f32 %v1723
    %vm1731 = vmor %vm1729, %vm1730
    %v1732 = vsel %vm1731, %v1723, %v1728
    %v1733 = vrsqrt.pop %v1722
    %v1734 = vmul.f32 %v1733, %v1722
    %v1735 = vmul.f32 %v1734, %v1733
    %v1736 = vmul.f32 0.5, %v1735
    %v1737 = vsub.f32 1.5, %v1736
    %v1738 = vmul.f32 %v1733, %v1737
    %vm1739 = vweird.f32 %v1722
    %vm1740 = vweird.f32 %v1733
    %vm1741 = vmor %vm1739, %vm1740
    %v1742 = vsel %vm1741, %v1733, %v1738
    %v1745 = vrot.slane %v1701, 1
    %v1748 = vsub.f32 %v1685, %v1700
    %v1749 = vsub.f32 %v1686, %v1745
    %v1752 = vrot.slane %v1742, 1
    %v1755 = vmul.f32 %v1748, %v1732
    %v1756 = vmul.f32 %v1749, %v1752
    %v1757 = vld [vmem:[%s6] sm:$0x1]
    %v1759 = vperm.slane %v1757, 0
    %v1761 = vmul.f32 %v1755, %v1759
    %v1762 = vmul.f32 %v1756, %v1759
    %v1763 = vld [vmem:[%s7] sm:$0x1]
    %v1765 = vperm.slane %v1763, 0
    %v1767 = vadd.f32 %v1761, %v1765
    %v1768 = vadd.f32 %v1762, %v1765
    %v1771 = vrot.slane %v1768, 7
    %vm1774 = vcmask 785415
    %1775 = vst.msk [vmem:[#allocation7 - $0x7] sm:$0x80] %vm1774, %v1767
    %vm1776 = vcmask 778240
    %1777 = vst.msk [vmem:[#allocation7 + $0x1] sm:$0x1] %vm1776, %v1771
    // Predicated region
    $region42: #{predictive_coding_gru.1} parent=1 // pred_check
      _
    $region43: #{predictive_coding_gru.1} parent=1 // pred_check_branch
      %1779 = sbr.rel (0) target = $region45
    $region44: #{predictive_coding_gru.1} parent=1 // pred_region
      %1781 = vsyncadd [#allocation4], 0
      %s1783 = sshll.u32 [#allocation7], 4
      %s1784 = int_to_ptr.vmem [resolvable:$true] %s1783
      %s1785 = sshll.u32 %s8, 4
      %s1786 = int_to_ptr.hbm [resolvable:$true] %s1785
      %1788 = dma.vmem_to_hbm [thread:$0]  %s1784, 32, %s1786, [#allocation4]
    $region45: #{predictive_coding_gru.1} parent=1 // pred_fallthru
      _
    // Predicated region
    $region46: #{predictive_coding_gru.1} parent=1 // pred_check
      _
    $region47: #{predictive_coding_gru.1} parent=1 // pred_check_branch
      %1790 = sbr.rel (0) target = $region49
    $region48: #{predictive_coding_gru.1} parent=1 // pred_region
      %1792 = dma.done [#allocation4], 32
    $region49: #{predictive_coding_gru.1} parent=1 // pred_fallthru
      _
    %1793 = vsyncpa [#allocation3], 1
    %1794 = vsyncpa [#allocation6], 1
    %1795 = vsyncpa [#allocation4], 1

</llo_original>
